<compile_context>
chip_gen: v5e
topology: v5e:2x2
jax: 0.10.0
libtpu: 0.0.40
codegen_flags: <defaults>
</compile_context>

<pallas_src>
import functools
import math

import jax
import jax.numpy as jnp
from jax.experimental import pallas as pl
from jax.experimental.pallas import tpu as pltpu

# Conservative per-kernel VMEM budget: tile targets below keep the
# double-buffered working set well under ~32 MiB, so this also fits the
# 64 MiB/TC of v7x (re-derive tile targets per generation for peak perf).
VMEM_LIMIT = 48 * 1024 * 1024


# ----------------------------- tiling helpers ------------------------------

def _fit(dim, target, align):
    """Largest tile <= target that divides `dim` and is a multiple of `align`
    (falls back to the full extent, which is always a legal block size)."""
    if dim <= target:
        return dim
    t = (target // align) * align
    while t >= align:
        if dim % t == 0:
            return t
        t -= align
    return dim


def _head_block(n_heads, head_dim, target=256):
    """Heads per attention grid step so the batched matmul is lane-dense."""
    hb = max(1, min(n_heads, target // max(head_dim, 1)))
    while n_heads % hb:
        hb -= 1
    return hb


# ----------------------------- Pallas kernels ------------------------------

def _matmul_kernel(x_ref, w_ref, o_ref, acc_ref):
    @pl.when(pl.program_id(2) == 0)
    def _():
        acc_ref[...] = jnp.zeros_like(acc_ref)

    acc_ref[...] += jnp.dot(x_ref[...], w_ref[...],
                            preferred_element_type=jnp.float32)

    @pl.when(pl.program_id(2) == pl.num_programs(2) - 1)
    def _():
        o_ref[...] = acc_ref[...].astype(o_ref.dtype)


def matmul_tiled(x, w, out_dtype=None, *, tm=256, tn=256, tk=512):
    """x: (M, K), w: (K, N) -> (M, N). Tiled MXU matmul with K accumulation."""
    M, K = x.shape
    K2, N = w.shape
    assert K == K2
    out_dtype = out_dtype or x.dtype
    tm = _fit(M, tm, 8)
    tn = _fit(N, tn, 128)
    tk = _fit(K, tk, 128)
    return pl.pallas_call(
        _matmul_kernel,
        out_shape=jax.ShapeDtypeStruct((M, N), out_dtype),
        grid=(M // tm, N // tn, K // tk),
        in_specs=[
            pl.BlockSpec((tm, tk), lambda i, j, k: (i, k)),
            pl.BlockSpec((tk, tn), lambda i, j, k: (k, j)),
        ],
        out_specs=pl.BlockSpec((tm, tn), lambda i, j, k: (i, j)),
        scratch_shapes=[pltpu.VMEM((tm, tn), jnp.float32)],
        compiler_params=pltpu.CompilerParams(
            dimension_semantics=("parallel", "parallel", "arbitrary"),
            vmem_limit_bytes=VMEM_LIMIT),
    )(x, w)


def _rmsnorm_matmul_kernel(x_ref, g_ref, w_ref, o_ref, *, eps):
    x = x_ref[...].astype(jnp.float32)
    ms = jnp.mean(x * x, axis=-1, keepdims=True)
    xn = (x * jax.lax.rsqrt(ms + eps) * g_ref[...].astype(jnp.float32))
    xn = xn.astype(w_ref.dtype)
    o_ref[...] = jnp.dot(xn, w_ref[...],
                         preferred_element_type=jnp.float32).astype(o_ref.dtype)


def rmsnorm_matmul(x, g, w, eps, out_dtype=None, *, tm=256, tn=256):
    """RMSNorm(x) * g then @ w, fused. x: (M, K), g: (K,), w: (K, N)."""
    M, K = x.shape
    N = w.shape[1]
    out_dtype = out_dtype or x.dtype
    tm = _fit(M, tm, 8)
    tn = _fit(N, tn, 128)
    return pl.pallas_call(
        functools.partial(_rmsnorm_matmul_kernel, eps=eps),
        out_shape=jax.ShapeDtypeStruct((M, N), out_dtype),
        grid=(M // tm, N // tn),
        in_specs=[
            pl.BlockSpec((tm, K), lambda i, j: (i, 0)),
            pl.BlockSpec((1, K), lambda i, j: (0, 0)),
            pl.BlockSpec((K, tn), lambda i, j: (0, j)),
        ],
        out_specs=pl.BlockSpec((tm, tn), lambda i, j: (i, j)),
        compiler_params=pltpu.CompilerParams(
            dimension_semantics=("parallel", "parallel"),
            vmem_limit_bytes=VMEM_LIMIT),
    )(x, g.reshape(1, K), w)


def _rmsnorm_swiglu_kernel(x_ref, g_ref, w1_ref, w3_ref, o_ref, *, eps):
    x = x_ref[...].astype(jnp.float32)
    ms = jnp.mean(x * x, axis=-1, keepdims=True)
    xn = (x * jax.lax.rsqrt(ms + eps) * g_ref[...].astype(jnp.float32))
    xn = xn.astype(w1_ref.dtype)
    h1 = jnp.dot(xn, w1_ref[...], preferred_element_type=jnp.float32)
    h3 = jnp.dot(xn, w3_ref[...], preferred_element_type=jnp.float32)
    o_ref[...] = (h1 * jax.nn.sigmoid(h1) * h3).astype(o_ref.dtype)


def rmsnorm_swiglu(x, g, w1, w3, eps, *, tm=256, tn=256):
    """SiLU(RMSNorm(x) @ w1) * (RMSNorm(x) @ w3), tiled over hidden dim."""
    M, K = x.shape
    Hd = w1.shape[1]
    tm = _fit(M, tm, 8)
    tn = _fit(Hd, tn, 128)
    return pl.pallas_call(
        functools.partial(_rmsnorm_swiglu_kernel, eps=eps),
        out_shape=jax.ShapeDtypeStruct((M, Hd), x.dtype),
        grid=(M // tm, Hd // tn),
        in_specs=[
            pl.BlockSpec((tm, K), lambda i, j: (i, 0)),
            pl.BlockSpec((1, K), lambda i, j: (0, 0)),
            pl.BlockSpec((K, tn), lambda i, j: (0, j)),
            pl.BlockSpec((K, tn), lambda i, j: (0, j)),
        ],
        out_specs=pl.BlockSpec((tm, tn), lambda i, j: (i, j)),
        compiler_params=pltpu.CompilerParams(
            dimension_semantics=("parallel", "parallel"),
            vmem_limit_bytes=VMEM_LIMIT),
    )(x, g.reshape(1, K), w1, w3)


def _flash_attn_kernel(q_ref, k_ref, v_ref, cq_ref, sq_ref, ck_ref, sk_ref,
                       o_ref, m_sc, l_sc, acc_sc,
                       *, scale, start_pos, tq, tkv, half):
    qi = pl.program_id(1)
    ki = pl.program_id(2)

    @pl.when(ki == 0)
    def _():
        m_sc[...] = jnp.full(m_sc.shape, -jnp.inf, dtype=jnp.float32)
        l_sc[...] = jnp.zeros_like(l_sc)
        acc_sc[...] = jnp.zeros_like(acc_sc)

    def rope(x, c, s):
        # Split-half rotation (wq/wk columns were permuted so the first half
        # of each head holds the even components, second half the odd ones).
        xe = x[..., :half]
        xo = x[..., half:]
        return jnp.concatenate([xe * c - xo * s, xe * s + xo * c], axis=-1)

    q = rope(q_ref[0].astype(jnp.float32),
             cq_ref[...][None], sq_ref[...][None])          # (Hb, tq, hd)
    k = rope(k_ref[0].astype(jnp.float32),
             ck_ref[...][None], sk_ref[...][None])          # (Hb, tkv, hd)
    v = v_ref[0]                                            # (Hb, tkv, hd)

    s_qk = jnp.einsum("hqd,hkd->hqk",
                      q.astype(v.dtype), k.astype(v.dtype),
                      preferred_element_type=jnp.float32) * scale

    # Causal mask generated in-kernel (matches torch.triu(diag=start_pos+1)).
    qpos = qi * tq + jax.lax.broadcasted_iota(jnp.int32, (tq, tkv), 0)
    kpos = ki * tkv + jax.lax.broadcasted_iota(jnp.int32, (tq, tkv), 1)
    masked = kpos >= qpos + (start_pos + 1)
    s_qk = jnp.where(masked[None, :, :], -jnp.inf, s_qk)

    m_prev = m_sc[...]
    m_new = jnp.maximum(m_prev, jnp.max(s_qk, axis=-1, keepdims=True))
    alpha = jnp.exp(m_prev - m_new)
    p = jnp.exp(s_qk - m_new)
    l_sc[...] = alpha * l_sc[...] + jnp.sum(p, axis=-1, keepdims=True)
    acc_sc[...] = alpha * acc_sc[...] + jnp.einsum(
        "hqk,hkd->hqd", p.astype(v.dtype), v,
        preferred_element_type=jnp.float32)
    m_sc[...] = m_new

    @pl.when(ki == pl.num_programs(2) - 1)
    def _():
        o_ref[0] = (acc_sc[...] *
                    pl.reciprocal(l_sc[...], approx=True)).astype(o_ref.dtype)


def flash_attention(q, k, v, cos, sin, *, start_pos, scale, tq=128, tkv=128):
    """q,k,v: (G, Hb, S, hd); cos/sin: (S, hd//2) f32 (rope fused in-kernel)."""
    G, Hb, S, hd = q.shape
    half = hd // 2
    tq = _fit(S, tq, 8)
    tkv = _fit(S, tkv, 8)
    qspec = pl.BlockSpec((1, Hb, tq, hd), lambda g, qi, ki: (g, 0, qi, 0))
    kspec = pl.BlockSpec((1, Hb, tkv, hd), lambda g, qi, ki: (g, 0, ki, 0))
    cqspec = pl.BlockSpec((tq, half), lambda g, qi, ki: (qi, 0))
    ckspec = pl.BlockSpec((tkv, half), lambda g, qi, ki: (ki, 0))
    return pl.pallas_call(
        functools.partial(_flash_attn_kernel, scale=scale,
                          start_pos=start_pos, tq=tq, tkv=tkv, half=half),
        out_shape=jax.ShapeDtypeStruct((G, Hb, S, hd), q.dtype),
        grid=(G, S // tq, S // tkv),
        in_specs=[qspec, kspec, kspec, cqspec, cqspec, ckspec, ckspec],
        out_specs=qspec,
        scratch_shapes=[
            pltpu.VMEM((Hb, tq, 1), jnp.float32),    # running max
            pltpu.VMEM((Hb, tq, 1), jnp.float32),    # running denom
            pltpu.VMEM((Hb, tq, hd), jnp.float32),   # output accumulator
        ],
        compiler_params=pltpu.CompilerParams(
            dimension_semantics=("parallel", "parallel", "arbitrary"),
            vmem_limit_bytes=VMEM_LIMIT),
    )(q, k, v, cos, sin, cos, sin)


# ------------------------------- model glue --------------------------------

def precompute_freqs(head_dim, end, theta=10000.0):
    inv = 1.0 / theta ** (
        jnp.arange(0, head_dim, 2, dtype=jnp.float32)[: head_dim // 2] / head_dim
    )
    t = jnp.arange(end, dtype=jnp.float32)
    freqs = jnp.outer(t, inv)
    return jnp.cos(freqs), jnp.sin(freqs)


def _permute_rope_columns(w, n_heads, head_dim):
    """Per head, reorder output columns to [even components | odd components].

    q.k is invariant to applying the same permutation to wq and wk, and it
    turns interleaved complex RoPE into a contiguous half-split rotation.
    """
    d_in, d_out = w.shape
    w = w.reshape(d_in, n_heads, head_dim // 2, 2)
    w = jnp.concatenate([w[..., 0], w[..., 1]], axis=-1)
    return w.reshape(d_in, d_out)


def attention_layer(x, lp, cos, sin, start_pos, n_heads, head_dim, eps):
    B, S, D = x.shape
    xf = x.reshape(B * S, D)
    # Fused RMSNorm + QKV projection (single matmul vs concatenated weight).
    qkv = rmsnorm_matmul(xf, lp["attn_norm"], lp["wqkv"], eps)      # (B*S, 3D)
    q, k, v = jnp.split(qkv, 3, axis=-1)

    hb = _head_block(n_heads, head_dim)
    groups = B * (n_heads // hb)

    def to_heads(t):
        return (t.reshape(B, S, n_heads, head_dim)
                 .transpose(0, 2, 1, 3)
                 .reshape(groups, hb, S, head_dim))

    o = flash_attention(to_heads(q), to_heads(k), to_heads(v), cos, sin,
                        start_pos=start_pos, scale=1.0 / math.sqrt(head_dim))
    o = (o.reshape(B, n_heads, S, head_dim)
          .transpose(0, 2, 1, 3)
          .reshape(B * S, D))
    return matmul_tiled(o, lp["wo"]).reshape(B, S, D)


def block_forward(x, lp, cos, sin, start_pos, n_heads, head_dim, eps):
    B, S, D = x.shape
    h = x + attention_layer(x, lp, cos, sin, start_pos, n_heads, head_dim, eps)
    hf = h.reshape(B * S, D)
    gate = rmsnorm_swiglu(hf, lp["ffn_norm"], lp["w1"], lp["w3"], eps)
    ff = matmul_tiled(gate, lp["w2"]).reshape(B, S, D)
    return h + ff


def transformer_forward(params, tokens, start_pos, cfg):
    B, S = tokens.shape
    dim = cfg["dim"]
    n_heads = cfg["n_heads"]
    head_dim = dim // n_heads
    # TODO(synk): token embedding gather stays in plain JAX (data-dependent gather).
    h = jnp.take(params["tok_emb"], tokens, axis=0)          # (B, S, dim) bf16
    cos = params["freqs_cos"][start_pos:start_pos + S]        # (S, hd//2) f32
    sin = params["freqs_sin"][start_pos:start_pos + S]
    # NOTE: causal mask (triu with diagonal=start_pos+1, exactly as the spec)
    # is generated inside the attention kernel -- no (S,S) HBM mask array.
    for lp in params["layers"]:
        h = block_forward(h, lp, cos, sin, start_pos, n_heads, head_dim,
                          cfg["norm_eps"])
    logits = rmsnorm_matmul(h.reshape(B * S, dim), params["norm"],
                            params["output"], cfg["norm_eps"],
                            out_dtype=jnp.float32)
    return logits.reshape(B, S, cfg["vocab_size"])


def init_params(key, cfg):
    dim = cfg["dim"]
    vocab = cfg["vocab_size"]
    n_heads = cfg["n_heads"]
    head_dim = dim // n_heads
    hidden = int(2 * (4 * dim) / 3)
    hidden = cfg["multiple_of"] * ((hidden + cfg["multiple_of"] - 1) // cfg["multiple_of"])

    keys = iter(jax.random.split(key, 2 + 7 * cfg["n_layers"]))

    def nrm(shape):
        w = 0.02 * jax.random.normal(next(keys), shape, dtype=jnp.float32)
        return w.astype(jnp.bfloat16)

    params = {
        "tok_emb": nrm((vocab, dim)),
        "output": nrm((dim, vocab)),
        "norm": jnp.ones((dim,), dtype=jnp.float32),
        "layers": [],
    }
    for _ in range(cfg["n_layers"]):
        wq = _permute_rope_columns(nrm((dim, dim)), n_heads, head_dim)
        wk = _permute_rope_columns(nrm((dim, dim)), n_heads, head_dim)
        wv = nrm((dim, dim))
        params["layers"].append({
            "wqkv": jnp.concatenate([wq, wk, wv], axis=1),   # (dim, 3*dim)
            "wo": nrm((dim, dim)),
            "w1": nrm((dim, hidden)),
            "w2": nrm((hidden, dim)),
            "w3": nrm((dim, hidden)),
            "attn_norm": jnp.ones((dim,), dtype=jnp.float32),
            "ffn_norm": jnp.ones((dim,), dtype=jnp.float32),
        })
    cos, sin = precompute_freqs(head_dim, cfg["max_seq_len"] * 2)
    params["freqs_cos"] = cos
    params["freqs_sin"] = sin
    return params


if __name__ == "__main__":
    cfg = dict(
        dim=64,
        n_layers=2,
        n_heads=4,
        vocab_size=128,
        multiple_of=32,
        norm_eps=1e-5,
        max_seq_len=32,
    )
    B, S = 2, 8
    start_pos = 0

    key = jax.random.PRNGKey(0)
    pkey, tkey = jax.random.split(key)
    params = init_params(pkey, cfg)
    tokens = jax.random.randint(tkey, (B, S), 0, cfg["vocab_size"], dtype=jnp.int32)

    fwd = jax.jit(functools.partial(transformer_forward, start_pos=start_pos, cfg=cfg))
    logits = fwd(params, tokens)
    logits = jax.block_until_ready(logits)

    assert logits.shape == (B, S, cfg["vocab_size"]), logits.shape
    assert logits.dtype == jnp.float32
    assert bool(jnp.all(jnp.isfinite(logits)))
    print("KERNEL_OK")
</pallas_src>

<mosaic_0001>
module attributes {stable_mosaic.version = 11 : i64} {
  func.func @_rmsnorm_matmul_kernel(%arg0: i32, %arg1: i32, %arg2: memref<16x64xbf16, #tpu.memory_space<vmem>>, %arg3: memref<1x64xf32, #tpu.memory_space<vmem>>, %arg4: memref<64x192xbf16, #tpu.memory_space<vmem>>, %arg5: memref<16x192xbf16, #tpu.memory_space<vmem>>) attributes {dimension_semantics = [#tpu.dimension_semantics<parallel>, #tpu.dimension_semantics<parallel>], iteration_bounds = array<i64: 1, 1>, scalar_prefetch = 0 : i64, scratch_operands = 0 : i64, tpu.core_type = #tpu.core_type<tc>, window_params = [{transform_indices = @transform_0, window_bounds = array<i64: 16, 64>}, {pipeline_mode = #tpu.pipeline_mode<synchronous>, transform_indices = @transform_1, window_bounds = array<i64: 1, 64>}, {transform_indices = @transform_2, window_bounds = array<i64: 64, 192>}, {transform_indices = @transform_3, window_bounds = array<i64: 16, 192>}]} {
    %c0 = arith.constant 0 : index
    %c0_0 = arith.constant 0 : index
    %0 = vector.load %arg2[%c0, %c0_0] : memref<16x64xbf16, #tpu.memory_space<vmem>>, vector<16x64xbf16>
    %1 = arith.extf %0 : vector<16x64xbf16> to vector<16x64xf32>
    %2 = arith.mulf %1, %1 : vector<16x64xf32>
    %cst = arith.constant dense<0.000000e+00> : vector<16xf32>
    %3 = vector.multi_reduction <add>, %2, %cst [1] : vector<16x64xf32> to vector<16xf32>
    %4 = vector.shape_cast %3 : vector<16xf32> to vector<16x1xf32>
    %cst_1 = arith.constant 6.400000e+01 : f32
    %5 = vector.broadcast %cst_1 : f32 to vector<16x1xf32>
    %6 = arith.divf %4, %5 : vector<16x1xf32>
    %cst_2 = arith.constant 9.99999974E-6 : f32
    %7 = vector.broadcast %cst_2 : f32 to vector<16x1xf32>
    %8 = arith.addf %6, %7 : vector<16x1xf32>
    %9 = math.rsqrt %8 : vector<16x1xf32>
    %10 = vector.broadcast %9 : vector<16x1xf32> to vector<16x64xf32>
    %11 = arith.mulf %1, %10 : vector<16x64xf32>
    %c0_3 = arith.constant 0 : index
    %c0_4 = arith.constant 0 : index
    %12 = vector.load %arg3[%c0_3, %c0_4] : memref<1x64xf32, #tpu.memory_space<vmem>>, vector<1x64xf32>
    %13 = vector.broadcast %12 : vector<1x64xf32> to vector<16x64xf32>
    %14 = arith.mulf %11, %13 : vector<16x64xf32>
    %15 = arith.truncf %14 : vector<16x64xf32> to vector<16x64xbf16>
    %c0_5 = arith.constant 0 : index
    %c0_6 = arith.constant 0 : index
    %16 = vector.load %arg4[%c0_5, %c0_6] : memref<64x192xbf16, #tpu.memory_space<vmem>>, vector<64x192xbf16>
    %cst_7 = arith.constant dense<0.000000e+00> : vector<16x192xf32>
    %17 = tpu.matmul %15, %16, %cst_7 {dimension_numbers = #tpu.dot_dimension_numbers<[1], [0], [0], [1], [0, 0, 1, 1], [], []>} : vector<16x64xbf16>, vector<64x192xbf16>, vector<16x192xf32> -> vector<16x192xf32>
    %18 = arith.truncf %17 : vector<16x192xf32> to vector<16x192xbf16>
    %c0_8 = arith.constant 0 : index
    %c0_9 = arith.constant 0 : index
    %19 = vector.load %arg5[%c0_8, %c0_9] : memref<16x192xbf16, #tpu.memory_space<vmem>>, vector<16x192xbf16>
    tpu.vector_store %arg5[%c0_8, %c0_9], %18 {strides = array<i32>} : memref<16x192xbf16, #tpu.memory_space<vmem>>, vector<16x192xbf16>,
    return
  }
  func.func @transform_0(%arg0: i32, %arg1: i32) -> (i32, i32) {
    %c0_i32 = arith.constant 0 : i32
    %c0_i32_0 = arith.constant 0 : i32
    return %arg0, %c0_i32 : i32, i32
  }
  func.func @transform_1(%arg0: i32, %arg1: i32) -> (i32, i32) {
    %c0_i32 = arith.constant 0 : i32
    %c0_i32_0 = arith.constant 0 : i32
    %c0_i32_1 = arith.constant 0 : i32
    return %c0_i32, %c0_i32_0 : i32, i32
  }
  func.func @transform_2(%arg0: i32, %arg1: i32) -> (i32, i32) {
    %c0_i32 = arith.constant 0 : i32
    %c0_i32_0 = arith.constant 0 : i32
    return %c0_i32, %arg1 : i32, i32
  }
  func.func @transform_3(%arg0: i32, %arg1: i32) -> (i32, i32) {
    %c0_i32 = arith.constant 0 : i32
    return %arg0, %arg1 : i32, i32
  }
}

module attributes {stable_mosaic.version = 11 : i64} {
  func.func @_matmul_kernel(%arg0: i32, %arg1: i32, %arg2: i32, %arg3: memref<16x64xbf16, #tpu.memory_space<vmem>>, %arg4: memref<64x64xbf16, #tpu.memory_space<vmem>>, %arg5: memref<16x64xbf16, #tpu.memory_space<vmem>>, %arg6: memref<16x64xf32, #tpu.memory_space<vmem>>) attributes {dimension_semantics = [#tpu.dimension_semantics<parallel>, #tpu.dimension_semantics<parallel>, #tpu.dimension_semantics<arbitrary>], iteration_bounds = array<i64: 1, 1, 1>, scalar_prefetch = 0 : i64, scratch_operands = 1 : i64, tpu.core_type = #tpu.core_type<tc>, window_params = [{transform_indices = @transform_0, window_bounds = array<i64: 16, 64>}, {transform_indices = @transform_1, window_bounds = array<i64: 64, 64>}, {transform_indices = @transform_2, window_bounds = array<i64: 16, 64>}]} {
    %c0_i32 = arith.constant 0 : i32
    %0 = arith.cmpi eq, %arg2, %c0_i32 : i32
    %1 = arith.extui %0 : i1 to i32
    %c0_i32_0 = arith.constant 0 : i32
    %2 = arith.cmpi ne, %1, %c0_i32_0 : i32
    scf.if %2 {
      %cst_10 = arith.constant 0.000000e+00 : f32
      %12 = vector.broadcast %cst_10 : f32 to vector<16x64xf32>
      %c0_11 = arith.constant 0 : index
      %c0_12 = arith.constant 0 : index
      %13 = vector.load %arg6[%c0_11, %c0_12] : memref<16x64xf32, #tpu.memory_space<vmem>>, vector<16x64xf32>
      tpu.vector_store %arg6[%c0_11, %c0_12], %12 {strides = array<i32>} : memref<16x64xf32, #tpu.memory_space<vmem>>, vector<16x64xf32>,
    } else {
    }
    %c0 = arith.constant 0 : index
    %c0_1 = arith.constant 0 : index
    %3 = vector.load %arg6[%c0, %c0_1] : memref<16x64xf32, #tpu.memory_space<vmem>>, vector<16x64xf32>
    %c0_2 = arith.constant 0 : index
    %c0_3 = arith.constant 0 : index
    %4 = vector.load %arg3[%c0_2, %c0_3] : memref<16x64xbf16, #tpu.memory_space<vmem>>, vector<16x64xbf16>
    %c0_4 = arith.constant 0 : index
    %c0_5 = arith.constant 0 : index
    %5 = vector.load %arg4[%c0_4, %c0_5] : memref<64x64xbf16, #tpu.memory_space<vmem>>, vector<64x64xbf16>
    %cst = arith.constant dense<0.000000e+00> : vector<16x64xf32>
    %6 = tpu.matmul %4, %5, %cst {dimension_numbers = #tpu.dot_dimension_numbers<[1], [0], [0], [1], [0, 0, 1, 1], [], []>} : vector<16x64xbf16>, vector<64x64xbf16>, vector<16x64xf32> -> vector<16x64xf32>
    %7 = arith.addf %3, %6 : vector<16x64xf32>
    %c0_6 = arith.constant 0 : index
    %c0_7 = arith.constant 0 : index
    %8 = vector.load %arg6[%c0_6, %c0_7] : memref<16x64xf32, #tpu.memory_space<vmem>>, vector<16x64xf32>
    tpu.vector_store %arg6[%c0_6, %c0_7], %7 {strides = array<i32>} : memref<16x64xf32, #tpu.memory_space<vmem>>, vector<16x64xf32>,
    %c0_i32_8 = arith.constant 0 : i32
    %9 = arith.cmpi eq, %arg2, %c0_i32_8 : i32
    %10 = arith.extui %9 : i1 to i32
    %c0_i32_9 = arith.constant 0 : i32
    %11 = arith.cmpi ne, %10, %c0_i32_9 : i32
    scf.if %11 {
      %c0_10 = arith.constant 0 : index
      %c0_11 = arith.constant 0 : index
      %12 = vector.load %arg6[%c0_10, %c0_11] : memref<16x64xf32, #tpu.memory_space<vmem>>, vector<16x64xf32>
      %13 = arith.truncf %12 : vector<16x64xf32> to vector<16x64xbf16>
      %c0_12 = arith.constant 0 : index
      %c0_13 = arith.constant 0 : index
      %14 = vector.load %arg5[%c0_12, %c0_13] : memref<16x64xbf16, #tpu.memory_space<vmem>>, vector<16x64xbf16>
      tpu.vector_store %arg5[%c0_12, %c0_13], %13 {strides = array<i32>} : memref<16x64xbf16, #tpu.memory_space<vmem>>, vector<16x64xbf16>,
    } else {
    }
    return
  }
  func.func @transform_0(%arg0: i32, %arg1: i32, %arg2: i32) -> (i32, i32) {
    %c0_i32 = arith.constant 0 : i32
    return %arg0, %arg2 : i32, i32
  }
  func.func @transform_1(%arg0: i32, %arg1: i32, %arg2: i32) -> (i32, i32) {
    %c0_i32 = arith.constant 0 : i32
    return %arg2, %arg1 : i32, i32
  }
  func.func @transform_2(%arg0: i32, %arg1: i32, %arg2: i32) -> (i32, i32) {
    %c0_i32 = arith.constant 0 : i32
    return %arg0, %arg1 : i32, i32
  }
}

module attributes {stable_mosaic.version = 11 : i64} {
  func.func @_flash_attn_kernel(%arg0: i32, %arg1: i32, %arg2: i32, %arg3: memref<1x4x8x16xbf16, #tpu.memory_space<vmem>>, %arg4: memref<1x4x8x16xbf16, #tpu.memory_space<vmem>>, %arg5: memref<1x4x8x16xbf16, #tpu.memory_space<vmem>>, %arg6: memref<8x8xf32, #tpu.memory_space<vmem>>, %arg7: memref<8x8xf32, #tpu.memory_space<vmem>>, %arg8: memref<8x8xf32, #tpu.memory_space<vmem>>, %arg9: memref<8x8xf32, #tpu.memory_space<vmem>>, %arg10: memref<1x4x8x16xbf16, #tpu.memory_space<vmem>>, %arg11: memref<4x8x1xf32, #tpu.memory_space<vmem>>, %arg12: memref<4x8x1xf32, #tpu.memory_space<vmem>>, %arg13: memref<4x8x16xf32, #tpu.memory_space<vmem>>) attributes {dimension_semantics = [#tpu.dimension_semantics<parallel>, #tpu.dimension_semantics<parallel>, #tpu.dimension_semantics<arbitrary>], iteration_bounds = array<i64: 2, 1, 1>, scalar_prefetch = 0 : i64, scratch_operands = 3 : i64, tpu.core_type = #tpu.core_type<tc>, window_params = [{transform_indices = @transform_0, window_bounds = array<i64: 1, 4, 8, 16>}, {transform_indices = @transform_1, window_bounds = array<i64: 1, 4, 8, 16>}, {transform_indices = @transform_2, window_bounds = array<i64: 1, 4, 8, 16>}, {transform_indices = @transform_3, window_bounds = array<i64: 8, 8>}, {transform_indices = @transform_4, window_bounds = array<i64: 8, 8>}, {transform_indices = @transform_5, window_bounds = array<i64: 8, 8>}, {transform_indices = @transform_6, window_bounds = array<i64: 8, 8>}, {transform_indices = @transform_7, window_bounds = array<i64: 1, 4, 8, 16>}]} {
    %c0_i32 = arith.constant 0 : i32
    %0 = arith.cmpi eq, %arg2, %c0_i32 : i32
    %1 = arith.extui %0 : i1 to i32
    %c0_i32_0 = arith.constant 0 : i32
    %2 = arith.cmpi ne, %1, %c0_i32_0 : i32
    scf.if %2 {
      %cst_46 = arith.constant 0xFF800000 : f32
      %92 = vector.broadcast %cst_46 : f32 to vector<4x8x1xf32>
      %c0_47 = arith.constant 0 : index
      %c0_48 = arith.constant 0 : index
      %c0_49 = arith.constant 0 : index
      %93 = vector.load %arg11[%c0_47, %c0_48, %c0_49] : memref<4x8x1xf32, #tpu.memory_space<vmem>>, vector<4x8x1xf32>
      tpu.vector_store %arg11[%c0_47, %c0_48, %c0_49], %92 {strides = array<i32>} : memref<4x8x1xf32, #tpu.memory_space<vmem>>, vector<4x8x1xf32>,
      %cst_50 = arith.constant 0.000000e+00 : f32
      %94 = vector.broadcast %cst_50 : f32 to vector<4x8x1xf32>
      %c0_51 = arith.constant 0 : index
      %c0_52 = arith.constant 0 : index
      %c0_53 = arith.constant 0 : index
      %95 = vector.load %arg12[%c0_51, %c0_52, %c0_53] : memref<4x8x1xf32, #tpu.memory_space<vmem>>, vector<4x8x1xf32>
      tpu.vector_store %arg12[%c0_51, %c0_52, %c0_53], %94 {strides = array<i32>} : memref<4x8x1xf32, #tpu.memory_space<vmem>>, vector<4x8x1xf32>,
      %cst_54 = arith.constant 0.000000e+00 : f32
      %96 = vector.broadcast %cst_54 : f32 to vector<4x8x16xf32>
      %c0_55 = arith.constant 0 : index
      %c0_56 = arith.constant 0 : index
      %c0_57 = arith.constant 0 : index
      %97 = vector.load %arg13[%c0_55, %c0_56, %c0_57] : memref<4x8x16xf32, #tpu.memory_space<vmem>>, vector<4x8x16xf32>
      tpu.vector_store %arg13[%c0_55, %c0_56, %c0_57], %96 {strides = array<i32>} : memref<4x8x16xf32, #tpu.memory_space<vmem>>, vector<4x8x16xf32>,
    } else {
    }
    %c0 = arith.constant 0 : index
    %c0_1 = arith.constant 0 : index
    %c0_2 = arith.constant 0 : index
    %c0_3 = arith.constant 0 : index
    %3 = vector.load %arg3[%c0, %c0_1, %c0_2, %c0_3] : memref<1x4x8x16xbf16, #tpu.memory_space<vmem>>, vector<1x4x8x16xbf16>
    %4 = vector.shape_cast %3 : vector<1x4x8x16xbf16> to vector<4x8x16xbf16>
    %5 = arith.extf %4 : vector<4x8x16xbf16> to vector<4x8x16xf32>
    %c0_4 = arith.constant 0 : index
    %c0_5 = arith.constant 0 : index
    %6 = vector.load %arg6[%c0_4, %c0_5] : memref<8x8xf32, #tpu.memory_space<vmem>>, vector<8x8xf32>
    %7 = vector.shape_cast %6 : vector<8x8xf32> to vector<1x8x8xf32>
    %c0_6 = arith.constant 0 : index
    %c0_7 = arith.constant 0 : index
    %8 = vector.load %arg7[%c0_6, %c0_7] : memref<8x8xf32, #tpu.memory_space<vmem>>, vector<8x8xf32>
    %9 = vector.shape_cast %8 : vector<8x8xf32> to vector<1x8x8xf32>
    %10 = vector.extract_strided_slice %5 {offsets = [0, 0, 0], sizes = [4, 8, 8], strides = [1, 1, 1]} : vector<4x8x16xf32> to vector<4x8x8xf32>
    %11 = vector.extract_strided_slice %5 {offsets = [0, 0, 8], sizes = [4, 8, 8], strides = [1, 1, 1]} : vector<4x8x16xf32> to vector<4x8x8xf32>
    %12 = vector.broadcast %7 : vector<1x8x8xf32> to vector<4x8x8xf32>
    %13 = arith.mulf %10, %12 : vector<4x8x8xf32>
    %14 = vector.broadcast %9 : vector<1x8x8xf32> to vector<4x8x8xf32>
    %15 = arith.mulf %11, %14 : vector<4x8x8xf32>
    %16 = arith.subf %13, %15 : vector<4x8x8xf32>
    %17 = vector.broadcast %9 : vector<1x8x8xf32> to vector<4x8x8xf32>
    %18 = arith.mulf %10, %17 : vector<4x8x8xf32>
    %19 = vector.broadcast %7 : vector<1x8x8xf32> to vector<4x8x8xf32>
    %20 = arith.mulf %11, %19 : vector<4x8x8xf32>
    %21 = arith.addf %18, %20 : vector<4x8x8xf32>
    %22 = tpu.concatenate %16, %21 in 2 : vector<4x8x8xf32>, vector<4x8x8xf32> -> vector<4x8x16xf32>
    %c0_8 = arith.constant 0 : index
    %c0_9 = arith.constant 0 : index
    %c0_10 = arith.constant 0 : index
    %c0_11 = arith.constant 0 : index
    %23 = vector.load %arg4[%c0_8, %c0_9, %c0_10, %c0_11] : memref<1x4x8x16xbf16, #tpu.memory_space<vmem>>, vector<1x4x8x16xbf16>
    %24 = vector.shape_cast %23 : vector<1x4x8x16xbf16> to vector<4x8x16xbf16>
    %25 = arith.extf %24 : vector<4x8x16xbf16> to vector<4x8x16xf32>
    %c0_12 = arith.constant 0 : index
    %c0_13 = arith.constant 0 : index
    %26 = vector.load %arg8[%c0_12, %c0_13] : memref<8x8xf32, #tpu.memory_space<vmem>>, vector<8x8xf32>
    %27 = vector.shape_cast %26 : vector<8x8xf32> to vector<1x8x8xf32>
    %c0_14 = arith.constant 0 : index
    %c0_15 = arith.constant 0 : index
    %28 = vector.load %arg9[%c0_14, %c0_15] : memref<8x8xf32, #tpu.memory_space<vmem>>, vector<8x8xf32>
    %29 = vector.shape_cast %28 : vector<8x8xf32> to vector<1x8x8xf32>
    %30 = vector.extract_strided_slice %25 {offsets = [0, 0, 0], sizes = [4, 8, 8], strides = [1, 1, 1]} : vector<4x8x16xf32> to vector<4x8x8xf32>
    %31 = vector.extract_strided_slice %25 {offsets = [0, 0, 8], sizes = [4, 8, 8], strides = [1, 1, 1]} : vector<4x8x16xf32> to vector<4x8x8xf32>
    %32 = vector.broadcast %27 : vector<1x8x8xf32> to vector<4x8x8xf32>
    %33 = arith.mulf %30, %32 : vector<4x8x8xf32>
    %34 = vector.broadcast %29 : vector<1x8x8xf32> to vector<4x8x8xf32>
    %35 = arith.mulf %31, %34 : vector<4x8x8xf32>
    %36 = arith.subf %33, %35 : vector<4x8x8xf32>
    %37 = vector.broadcast %29 : vector<1x8x8xf32> to vector<4x8x8xf32>
    %38 = arith.mulf %30, %37 : vector<4x8x8xf32>
    %39 = vector.broadcast %27 : vector<1x8x8xf32> to vector<4x8x8xf32>
    %40 = arith.mulf %31, %39 : vector<4x8x8xf32>
    %41 = arith.addf %38, %40 : vector<4x8x8xf32>
    %42 = tpu.concatenate %36, %41 in 2 : vector<4x8x8xf32>, vector<4x8x8xf32> -> vector<4x8x16xf32>
    %c0_16 = arith.constant 0 : index
    %c0_17 = arith.constant 0 : index
    %c0_18 = arith.constant 0 : index
    %c0_19 = arith.constant 0 : index
    %43 = vector.load %arg5[%c0_16, %c0_17, %c0_18, %c0_19] : memref<1x4x8x16xbf16, #tpu.memory_space<vmem>>, vector<1x4x8x16xbf16>
    %44 = vector.shape_cast %43 : vector<1x4x8x16xbf16> to vector<4x8x16xbf16>
    %45 = arith.truncf %22 : vector<4x8x16xf32> to vector<4x8x16xbf16>
    %46 = arith.truncf %42 : vector<4x8x16xf32> to vector<4x8x16xbf16>
    "tpu.trace_start"() <{level = 10 : i32, message = "hqd,hkd->hqk"}> : () -> ()
    %cst = arith.constant dense<0.000000e+00> : vector<4x8x8xf32>
    %47 = tpu.matmul %45, %46, %cst {dimension_numbers = #tpu.dot_dimension_numbers<[2], [2], [1], [1], [0, 0, 0, 1, 1, 1], [0], [0]>} : vector<4x8x16xbf16>, vector<4x8x16xbf16>, vector<4x8x8xf32> -> vector<4x8x8xf32>
    "tpu.trace_stop"() : () -> ()
    %cst_20 = arith.constant 2.500000e-01 : f32
    %48 = vector.broadcast %cst_20 : f32 to vector<4x8x8xf32>
    %49 = arith.mulf %47, %48 : vector<4x8x8xf32>
    %c8_i32 = arith.constant 8 : i32
    %50 = arith.muli %arg1, %c8_i32 : i32
    %51 = tpu.iota {dimensions = array<i32: 0>} : vector<8x8xi32>
    %52 = vector.broadcast %50 : i32 to vector<8x8xi32>
    %53 = arith.addi %52, %51 : vector<8x8xi32>
    %c8_i32_21 = arith.constant 8 : i32
    %54 = arith.muli %arg2, %c8_i32_21 : i32
    %55 = tpu.iota {dimensions = array<i32: 1>} : vector<8x8xi32>
    %56 = vector.broadcast %54 : i32 to vector<8x8xi32>
    %57 = arith.addi %56, %55 : vector<8x8xi32>
    %c1_i32 = arith.constant 1 : i32
    %58 = vector.broadcast %c1_i32 : i32 to vector<8x8xi32>
    %59 = arith.addi %53, %58 : vector<8x8xi32>
    %60 = arith.cmpi sge, %57, %59 : vector<8x8xi32>
    %61 = vector.shape_cast %60 : vector<8x8xi1> to vector<1x8x8xi1>
    %cst_22 = arith.constant 0xFF800000 : f32
    %62 = vector.shape_cast %61 : vector<1x8x8xi1> to vector<1x8x8xi1>
    %63 = vector.broadcast %62 : vector<1x8x8xi1> to vector<4x8x8xi1>
    %64 = vector.broadcast %cst_22 : f32 to vector<4x8x8xf32>
    %65 = arith.select %63, %64, %49 : vector<4x8x8xi1>, vector<4x8x8xf32>
    %c0_23 = arith.constant 0 : index
    %c0_24 = arith.constant 0 : index
    %c0_25 = arith.constant 0 : index
    %66 = vector.load %arg11[%c0_23, %c0_24, %c0_25] : memref<4x8x1xf32, #tpu.memory_space<vmem>>, vector<4x8x1xf32>
    %cst_26 = arith.constant dense<0xFF800000> : vector<4x8xf32>
    %67 = vector.multi_reduction <maximumf>, %65, %cst_26 [2] : vector<4x8x8xf32> to vector<4x8xf32>
    %68 = vector.shape_cast %67 : vector<4x8xf32> to vector<4x8x1xf32>
    %69 = arith.maximumf %66, %68 : vector<4x8x1xf32>
    %70 = arith.subf %66, %69 : vector<4x8x1xf32>
    %71 = math.exp %70 : vector<4x8x1xf32>
    %72 = vector.broadcast %69 : vector<4x8x1xf32> to vector<4x8x8xf32>
    %73 = arith.subf %65, %72 : vector<4x8x8xf32>
    %74 = math.exp %73 : vector<4x8x8xf32>
    %c0_27 = arith.constant 0 : index
    %c0_28 = arith.constant 0 : index
    %c0_29 = arith.constant 0 : index
    %75 = vector.load %arg12[%c0_27, %c0_28, %c0_29] : memref<4x8x1xf32, #tpu.memory_space<vmem>>, vector<4x8x1xf32>
    %76 = arith.mulf %71, %75 : vector<4x8x1xf32>
    %cst_30 = arith.constant dense<0.000000e+00> : vector<4x8xf32>
    %77 = vector.multi_reduction <add>, %74, %cst_30 [2] : vector<4x8x8xf32> to vector<4x8xf32>
    %78 = vector.shape_cast %77 : vector<4x8xf32> to vector<4x8x1xf32>
    %79 = arith.addf %76, %78 : vector<4x8x1xf32>
    %c0_31 = arith.constant 0 : index
    %c0_32 = arith.constant 0 : index
    %c0_33 = arith.constant 0 : index
    %80 = vector.load %arg12[%c0_31, %c0_32, %c0_33] : memref<4x8x1xf32, #tpu.memory_space<vmem>>, vector<4x8x1xf32>
    tpu.vector_store %arg12[%c0_31, %c0_32, %c0_33], %79 {strides = array<i32>} : memref<4x8x1xf32, #tpu.memory_space<vmem>>, vector<4x8x1xf32>,
    %c0_34 = arith.constant 0 : index
    %c0_35 = arith.constant 0 : index
    %c0_36 = arith.constant 0 : index
    %81 = vector.load %arg13[%c0_34, %c0_35, %c0_36] : memref<4x8x16xf32, #tpu.memory_space<vmem>>, vector<4x8x16xf32>
    %82 = vector.broadcast %71 : vector<4x8x1xf32> to vector<4x8x16xf32>
    %83 = arith.mulf %82, %81 : vector<4x8x16xf32>
    %84 = arith.truncf %74 : vector<4x8x8xf32> to vector<4x8x8xbf16>
    "tpu.trace_start"() <{level = 10 : i32, message = "hqk,hkd->hqd"}> : () -> ()
    %cst_37 = arith.constant dense<0.000000e+00> : vector<4x8x16xf32>
    %85 = tpu.matmul %84, %44, %cst_37 {dimension_numbers = #tpu.dot_dimension_numbers<[2], [1], [1], [2], [0, 0, 0, 1, 1, 2], [0], [0]>} : vector<4x8x8xbf16>, vector<4x8x16xbf16>, vector<4x8x16xf32> -> vector<4x8x16xf32>
    "tpu.trace_stop"() : () -> ()
    %86 = arith.addf %83, %85 : vector<4x8x16xf32>
    %c0_38 = arith.constant 0 : index
    %c0_39 = arith.constant 0 : index
    %c0_40 = arith.constant 0 : index
    %87 = vector.load %arg13[%c0_38, %c0_39, %c0_40] : memref<4x8x16xf32, #tpu.memory_space<vmem>>, vector<4x8x16xf32>
    tpu.vector_store %arg13[%c0_38, %c0_39, %c0_40], %86 {strides = array<i32>} : memref<4x8x16xf32, #tpu.memory_space<vmem>>, vector<4x8x16xf32>,
    %c0_41 = arith.constant 0 : index
    %c0_42 = arith.constant 0 : index
    %c0_43 = arith.constant 0 : index
    %88 = vector.load %arg11[%c0_41, %c0_42, %c0_43] : memref<4x8x1xf32, #tpu.memory_space<vmem>>, vector<4x8x1xf32>
    tpu.vector_store %arg11[%c0_41, %c0_42, %c0_43], %69 {strides = array<i32>} : memref<4x8x1xf32, #tpu.memory_space<vmem>>, vector<4x8x1xf32>,
    %c0_i32_44 = arith.constant 0 : i32
    %89 = arith.cmpi eq, %arg2, %c0_i32_44 : i32
    %90 = arith.extui %89 : i1 to i32
    %c0_i32_45 = arith.constant 0 : i32
    %91 = arith.cmpi ne, %90, %c0_i32_45 : i32
    scf.if %91 {
      %c0_46 = arith.constant 0 : index
      %c0_47 = arith.constant 0 : index
      %c0_48 = arith.constant 0 : index
      %92 = vector.load %arg13[%c0_46, %c0_47, %c0_48] : memref<4x8x16xf32, #tpu.memory_space<vmem>>, vector<4x8x16xf32>
      %c0_49 = arith.constant 0 : index
      %c0_50 = arith.constant 0 : index
      %c0_51 = arith.constant 0 : index
      %93 = vector.load %arg12[%c0_49, %c0_50, %c0_51] : memref<4x8x1xf32, #tpu.memory_space<vmem>>, vector<4x8x1xf32>
      %94 = tpu.reciprocal %93 {approx = true} : vector<4x8x1xf32> -> vector<4x8x1xf32>
      %95 = vector.broadcast %94 : vector<4x8x1xf32> to vector<4x8x16xf32>
      %96 = arith.mulf %92, %95 : vector<4x8x16xf32>
      %97 = arith.truncf %96 : vector<4x8x16xf32> to vector<4x8x16xbf16>
      %c0_52 = arith.constant 0 : index
      %c0_53 = arith.constant 0 : index
      %c0_54 = arith.constant 0 : index
      %c0_55 = arith.constant 0 : index
      %98 = vector.load %arg10[%c0_52, %c0_53, %c0_54, %c0_55] : memref<1x4x8x16xbf16, #tpu.memory_space<vmem>>, vector<1x4x8x16xbf16>
      %99 = vector.shape_cast %98 : vector<1x4x8x16xbf16> to vector<4x8x16xbf16>
      %100 = vector.shape_cast %97 : vector<4x8x16xbf16> to vector<1x4x8x16xbf16>
      tpu.vector_store %arg10[%c0_52, %c0_53, %c0_54, %c0_55], %100 {strides = array<i32>} : memref<1x4x8x16xbf16, #tpu.memory_space<vmem>>, vector<1x4x8x16xbf16>,
    } else {
    }
    return
  }
  func.func @transform_0(%arg0: i32, %arg1: i32, %arg2: i32) -> (i32, i32, i32, i32) {
    %c0_i32 = arith.constant 0 : i32
    %c0_i32_0 = arith.constant 0 : i32
    %c0_i32_1 = arith.constant 0 : i32
    return %arg0, %c0_i32, %arg1, %c0_i32_0 : i32, i32, i32, i32
  }
  func.func @transform_1(%arg0: i32, %arg1: i32, %arg2: i32) -> (i32, i32, i32, i32) {
    %c0_i32 = arith.constant 0 : i32
    %c0_i32_0 = arith.constant 0 : i32
    %c0_i32_1 = arith.constant 0 : i32
    return %arg0, %c0_i32, %arg2, %c0_i32_0 : i32, i32, i32, i32
  }
  func.func @transform_2(%arg0: i32, %arg1: i32, %arg2: i32) -> (i32, i32, i32, i32) {
    %c0_i32 = arith.constant 0 : i32
    %c0_i32_0 = arith.constant 0 : i32
    %c0_i32_1 = arith.constant 0 : i32
    return %arg0, %c0_i32, %arg2, %c0_i32_0 : i32, i32, i32, i32
  }
  func.func @transform_3(%arg0: i32, %arg1: i32, %arg2: i32) -> (i32, i32) {
    %c0_i32 = arith.constant 0 : i32
    %c0_i32_0 = arith.constant 0 : i32
    return %arg1, %c0_i32 : i32, i32
  }
  func.func @transform_4(%arg0: i32, %arg1: i32, %arg2: i32) -> (i32, i32) {
    %c0_i32 = arith.constant 0 : i32
    %c0_i32_0 = arith.constant 0 : i32
    return %arg1, %c0_i32 : i32, i32
  }
  func.func @transform_5(%arg0: i32, %arg1: i32, %arg2: i32) -> (i32, i32) {
    %c0_i32 = arith.constant 0 : i32
    %c0_i32_0 = arith.constant 0 : i32
    return %arg2, %c0_i32 : i32, i32
  }
  func.func @transform_6(%arg0: i32, %arg1: i32, %arg2: i32) -> (i32, i32) {
    %c0_i32 = arith.constant 0 : i32
    %c0_i32_0 = arith.constant 0 : i32
    return %arg2, %c0_i32 : i32, i32
  }
  func.func @transform_7(%arg0: i32, %arg1: i32, %arg2: i32) -> (i32, i32, i32, i32) {
    %c0_i32 = arith.constant 0 : i32
    %c0_i32_0 = arith.constant 0 : i32
    %c0_i32_1 = arith.constant 0 : i32
    return %arg0, %c0_i32, %arg1, %c0_i32_0 : i32, i32, i32, i32
  }
}

module attributes {stable_mosaic.version = 11 : i64} {
  func.func @_rmsnorm_swiglu_kernel(%arg0: i32, %arg1: i32, %arg2: memref<16x64xbf16, #tpu.memory_space<vmem>>, %arg3: memref<1x64xf32, #tpu.memory_space<vmem>>, %arg4: memref<64x192xbf16, #tpu.memory_space<vmem>>, %arg5: memref<64x192xbf16, #tpu.memory_space<vmem>>, %arg6: memref<16x192xbf16, #tpu.memory_space<vmem>>) attributes {dimension_semantics = [#tpu.dimension_semantics<parallel>, #tpu.dimension_semantics<parallel>], iteration_bounds = array<i64: 1, 1>, scalar_prefetch = 0 : i64, scratch_operands = 0 : i64, tpu.core_type = #tpu.core_type<tc>, window_params = [{transform_indices = @transform_0, window_bounds = array<i64: 16, 64>}, {pipeline_mode = #tpu.pipeline_mode<synchronous>, transform_indices = @transform_1, window_bounds = array<i64: 1, 64>}, {transform_indices = @transform_2, window_bounds = array<i64: 64, 192>}, {transform_indices = @transform_3, window_bounds = array<i64: 64, 192>}, {transform_indices = @transform_4, window_bounds = array<i64: 16, 192>}]} {
    %c0 = arith.constant 0 : index
    %c0_0 = arith.constant 0 : index
    %0 = vector.load %arg2[%c0, %c0_0] : memref<16x64xbf16, #tpu.memory_space<vmem>>, vector<16x64xbf16>
    %1 = arith.extf %0 : vector<16x64xbf16> to vector<16x64xf32>
    %2 = arith.mulf %1, %1 : vector<16x64xf32>
    %cst = arith.constant dense<0.000000e+00> : vector<16xf32>
    %3 = vector.multi_reduction <add>, %2, %cst [1] : vector<16x64xf32> to vector<16xf32>
    %4 = vector.shape_cast %3 : vector<16xf32> to vector<16x1xf32>
    %cst_1 = arith.constant 6.400000e+01 : f32
    %5 = vector.broadcast %cst_1 : f32 to vector<16x1xf32>
    %6 = arith.divf %4, %5 : vector<16x1xf32>
    %cst_2 = arith.constant 9.99999974E-6 : f32
    %7 = vector.broadcast %cst_2 : f32 to vector<16x1xf32>
    %8 = arith.addf %6, %7 : vector<16x1xf32>
    %9 = math.rsqrt %8 : vector<16x1xf32>
    %10 = vector.broadcast %9 : vector<16x1xf32> to vector<16x64xf32>
    %11 = arith.mulf %1, %10 : vector<16x64xf32>
    %c0_3 = arith.constant 0 : index
    %c0_4 = arith.constant 0 : index
    %12 = vector.load %arg3[%c0_3, %c0_4] : memref<1x64xf32, #tpu.memory_space<vmem>>, vector<1x64xf32>
    %13 = vector.broadcast %12 : vector<1x64xf32> to vector<16x64xf32>
    %14 = arith.mulf %11, %13 : vector<16x64xf32>
    %15 = arith.truncf %14 : vector<16x64xf32> to vector<16x64xbf16>
    %c0_5 = arith.constant 0 : index
    %c0_6 = arith.constant 0 : index
    %16 = vector.load %arg4[%c0_5, %c0_6] : memref<64x192xbf16, #tpu.memory_space<vmem>>, vector<64x192xbf16>
    %cst_7 = arith.constant dense<0.000000e+00> : vector<16x192xf32>
    %17 = tpu.matmul %15, %16, %cst_7 {dimension_numbers = #tpu.dot_dimension_numbers<[1], [0], [0], [1], [0, 0, 1, 1], [], []>} : vector<16x64xbf16>, vector<64x192xbf16>, vector<16x192xf32> -> vector<16x192xf32>
    %c0_8 = arith.constant 0 : index
    %c0_9 = arith.constant 0 : index
    %18 = vector.load %arg5[%c0_8, %c0_9] : memref<64x192xbf16, #tpu.memory_space<vmem>>, vector<64x192xbf16>
    %cst_10 = arith.constant dense<0.000000e+00> : vector<16x192xf32>
    %19 = tpu.matmul %15, %18, %cst_10 {dimension_numbers = #tpu.dot_dimension_numbers<[1], [0], [0], [1], [0, 0, 1, 1], [], []>} : vector<16x64xbf16>, vector<64x192xbf16>, vector<16x192xf32> -> vector<16x192xf32>
    %20 = arith.negf %17 : vector<16x192xf32>
    %21 = math.exp %20 : vector<16x192xf32>
    %cst_11 = arith.constant 1.000000e+00 : f32
    %22 = vector.broadcast %cst_11 : f32 to vector<16x192xf32>
    %23 = arith.addf %22, %21 : vector<16x192xf32>
    %24 = arith.divf %22, %23 : vector<16x192xf32>
    %25 = arith.mulf %17, %24 : vector<16x192xf32>
    %26 = arith.mulf %25, %19 : vector<16x192xf32>
    %27 = arith.truncf %26 : vector<16x192xf32> to vector<16x192xbf16>
    %c0_12 = arith.constant 0 : index
    %c0_13 = arith.constant 0 : index
    %28 = vector.load %arg6[%c0_12, %c0_13] : memref<16x192xbf16, #tpu.memory_space<vmem>>, vector<16x192xbf16>
    tpu.vector_store %arg6[%c0_12, %c0_13], %27 {strides = array<i32>} : memref<16x192xbf16, #tpu.memory_space<vmem>>, vector<16x192xbf16>,
    return
  }
  func.func @transform_0(%arg0: i32, %arg1: i32) -> (i32, i32) {
    %c0_i32 = arith.constant 0 : i32
    %c0_i32_0 = arith.constant 0 : i32
    return %arg0, %c0_i32 : i32, i32
  }
  func.func @transform_1(%arg0: i32, %arg1: i32) -> (i32, i32) {
    %c0_i32 = arith.constant 0 : i32
    %c0_i32_0 = arith.constant 0 : i32
    %c0_i32_1 = arith.constant 0 : i32
    return %c0_i32, %c0_i32_0 : i32, i32
  }
  func.func @transform_2(%arg0: i32, %arg1: i32) -> (i32, i32) {
    %c0_i32 = arith.constant 0 : i32
    %c0_i32_0 = arith.constant 0 : i32
    return %c0_i32, %arg1 : i32, i32
  }
  func.func @transform_3(%arg0: i32, %arg1: i32) -> (i32, i32) {
    %c0_i32 = arith.constant 0 : i32
    %c0_i32_0 = arith.constant 0 : i32
    return %c0_i32, %arg1 : i32, i32
  }
  func.func @transform_4(%arg0: i32, %arg1: i32) -> (i32, i32) {
    %c0_i32 = arith.constant 0 : i32
    return %arg0, %arg1 : i32, i32
  }
}

module attributes {stable_mosaic.version = 11 : i64} {
  func.func @_matmul_kernel(%arg0: i32, %arg1: i32, %arg2: i32, %arg3: memref<16x192xbf16, #tpu.memory_space<vmem>>, %arg4: memref<192x64xbf16, #tpu.memory_space<vmem>>, %arg5: memref<16x64xbf16, #tpu.memory_space<vmem>>, %arg6: memref<16x64xf32, #tpu.memory_space<vmem>>) attributes {dimension_semantics = [#tpu.dimension_semantics<parallel>, #tpu.dimension_semantics<parallel>, #tpu.dimension_semantics<arbitrary>], iteration_bounds = array<i64: 1, 1, 1>, scalar_prefetch = 0 : i64, scratch_operands = 1 : i64, tpu.core_type = #tpu.core_type<tc>, window_params = [{transform_indices = @transform_0, window_bounds = array<i64: 16, 192>}, {transform_indices = @transform_1, window_bounds = array<i64: 192, 64>}, {transform_indices = @transform_2, window_bounds = array<i64: 16, 64>}]} {
    %c0_i32 = arith.constant 0 : i32
    %0 = arith.cmpi eq, %arg2, %c0_i32 : i32
    %1 = arith.extui %0 : i1 to i32
    %c0_i32_0 = arith.constant 0 : i32
    %2 = arith.cmpi ne, %1, %c0_i32_0 : i32
    scf.if %2 {
      %cst_10 = arith.constant 0.000000e+00 : f32
      %12 = vector.broadcast %cst_10 : f32 to vector<16x64xf32>
      %c0_11 = arith.constant 0 : index
      %c0_12 = arith.constant 0 : index
      %13 = vector.load %arg6[%c0_11, %c0_12] : memref<16x64xf32, #tpu.memory_space<vmem>>, vector<16x64xf32>
      tpu.vector_store %arg6[%c0_11, %c0_12], %12 {strides = array<i32>} : memref<16x64xf32, #tpu.memory_space<vmem>>, vector<16x64xf32>,
    } else {
    }
    %c0 = arith.constant 0 : index
    %c0_1 = arith.constant 0 : index
    %3 = vector.load %arg6[%c0, %c0_1] : memref<16x64xf32, #tpu.memory_space<vmem>>, vector<16x64xf32>
    %c0_2 = arith.constant 0 : index
    %c0_3 = arith.constant 0 : index
    %4 = vector.load %arg3[%c0_2, %c0_3] : memref<16x192xbf16, #tpu.memory_space<vmem>>, vector<16x192xbf16>
    %c0_4 = arith.constant 0 : index
    %c0_5 = arith.constant 0 : index
    %5 = vector.load %arg4[%c0_4, %c0_5] : memref<192x64xbf16, #tpu.memory_space<vmem>>, vector<192x64xbf16>
    %cst = arith.constant dense<0.000000e+00> : vector<16x64xf32>
    %6 = tpu.matmul %4, %5, %cst {dimension_numbers = #tpu.dot_dimension_numbers<[1], [0], [0], [1], [0, 0, 1, 1], [], []>} : vector<16x192xbf16>, vector<192x64xbf16>, vector<16x64xf32> -> vector<16x64xf32>
    %7 = arith.addf %3, %6 : vector<16x64xf32>
    %c0_6 = arith.constant 0 : index
    %c0_7 = arith.constant 0 : index
    %8 = vector.load %arg6[%c0_6, %c0_7] : memref<16x64xf32, #tpu.memory_space<vmem>>, vector<16x64xf32>
    tpu.vector_store %arg6[%c0_6, %c0_7], %7 {strides = array<i32>} : memref<16x64xf32, #tpu.memory_space<vmem>>, vector<16x64xf32>,
    %c0_i32_8 = arith.constant 0 : i32
    %9 = arith.cmpi eq, %arg2, %c0_i32_8 : i32
    %10 = arith.extui %9 : i1 to i32
    %c0_i32_9 = arith.constant 0 : i32
    %11 = arith.cmpi ne, %10, %c0_i32_9 : i32
    scf.if %11 {
      %c0_10 = arith.constant 0 : index
      %c0_11 = arith.constant 0 : index
      %12 = vector.load %arg6[%c0_10, %c0_11] : memref<16x64xf32, #tpu.memory_space<vmem>>, vector<16x64xf32>
      %13 = arith.truncf %12 : vector<16x64xf32> to vector<16x64xbf16>
      %c0_12 = arith.constant 0 : index
      %c0_13 = arith.constant 0 : index
      %14 = vector.load %arg5[%c0_12, %c0_13] : memref<16x64xbf16, #tpu.memory_space<vmem>>, vector<16x64xbf16>
      tpu.vector_store %arg5[%c0_12, %c0_13], %13 {strides = array<i32>} : memref<16x64xbf16, #tpu.memory_space<vmem>>, vector<16x64xbf16>,
    } else {
    }
    return
  }
  func.func @transform_0(%arg0: i32, %arg1: i32, %arg2: i32) -> (i32, i32) {
    %c0_i32 = arith.constant 0 : i32
    return %arg0, %arg2 : i32, i32
  }
  func.func @transform_1(%arg0: i32, %arg1: i32, %arg2: i32) -> (i32, i32) {
    %c0_i32 = arith.constant 0 : i32
    return %arg2, %arg1 : i32, i32
  }
  func.func @transform_2(%arg0: i32, %arg1: i32, %arg2: i32) -> (i32, i32) {
    %c0_i32 = arith.constant 0 : i32
    return %arg0, %arg1 : i32, i32
  }
}

module attributes {stable_mosaic.version = 11 : i64} {
  func.func @_rmsnorm_matmul_kernel(%arg0: i32, %arg1: i32, %arg2: memref<16x64xbf16, #tpu.memory_space<vmem>>, %arg3: memref<1x64xf32, #tpu.memory_space<vmem>>, %arg4: memref<64x128xbf16, #tpu.memory_space<vmem>>, %arg5: memref<16x128xf32, #tpu.memory_space<vmem>>) attributes {dimension_semantics = [#tpu.dimension_semantics<parallel>, #tpu.dimension_semantics<parallel>], iteration_bounds = array<i64: 1, 1>, scalar_prefetch = 0 : i64, scratch_operands = 0 : i64, tpu.core_type = #tpu.core_type<tc>, window_params = [{transform_indices = @transform_0, window_bounds = array<i64: 16, 64>}, {pipeline_mode = #tpu.pipeline_mode<synchronous>, transform_indices = @transform_1, window_bounds = array<i64: 1, 64>}, {transform_indices = @transform_2, window_bounds = array<i64: 64, 128>}, {transform_indices = @transform_3, window_bounds = array<i64: 16, 128>}]} {
    %c0 = arith.constant 0 : index
    %c0_0 = arith.constant 0 : index
    %0 = vector.load %arg2[%c0, %c0_0] : memref<16x64xbf16, #tpu.memory_space<vmem>>, vector<16x64xbf16>
    %1 = arith.extf %0 : vector<16x64xbf16> to vector<16x64xf32>
    %2 = arith.mulf %1, %1 : vector<16x64xf32>
    %cst = arith.constant dense<0.000000e+00> : vector<16xf32>
    %3 = vector.multi_reduction <add>, %2, %cst [1] : vector<16x64xf32> to vector<16xf32>
    %4 = vector.shape_cast %3 : vector<16xf32> to vector<16x1xf32>
    %cst_1 = arith.constant 6.400000e+01 : f32
    %5 = vector.broadcast %cst_1 : f32 to vector<16x1xf32>
    %6 = arith.divf %4, %5 : vector<16x1xf32>
    %cst_2 = arith.constant 9.99999974E-6 : f32
    %7 = vector.broadcast %cst_2 : f32 to vector<16x1xf32>
    %8 = arith.addf %6, %7 : vector<16x1xf32>
    %9 = math.rsqrt %8 : vector<16x1xf32>
    %10 = vector.broadcast %9 : vector<16x1xf32> to vector<16x64xf32>
    %11 = arith.mulf %1, %10 : vector<16x64xf32>
    %c0_3 = arith.constant 0 : index
    %c0_4 = arith.constant 0 : index
    %12 = vector.load %arg3[%c0_3, %c0_4] : memref<1x64xf32, #tpu.memory_space<vmem>>, vector<1x64xf32>
    %13 = vector.broadcast %12 : vector<1x64xf32> to vector<16x64xf32>
    %14 = arith.mulf %11, %13 : vector<16x64xf32>
    %15 = arith.truncf %14 : vector<16x64xf32> to vector<16x64xbf16>
    %c0_5 = arith.constant 0 : index
    %c0_6 = arith.constant 0 : index
    %16 = vector.load %arg4[%c0_5, %c0_6] : memref<64x128xbf16, #tpu.memory_space<vmem>>, vector<64x128xbf16>
    %cst_7 = arith.constant dense<0.000000e+00> : vector<16x128xf32>
    %17 = tpu.matmul %15, %16, %cst_7 {dimension_numbers = #tpu.dot_dimension_numbers<[1], [0], [0], [1], [0, 0, 1, 1], [], []>} : vector<16x64xbf16>, vector<64x128xbf16>, vector<16x128xf32> -> vector<16x128xf32>
    %c0_8 = arith.constant 0 : index
    %c0_9 = arith.constant 0 : index
    %18 = vector.load %arg5[%c0_8, %c0_9] : memref<16x128xf32, #tpu.memory_space<vmem>>, vector<16x128xf32>
    tpu.vector_store %arg5[%c0_8, %c0_9], %17 {strides = array<i32>} : memref<16x128xf32, #tpu.memory_space<vmem>>, vector<16x128xf32>,
    return
  }
  func.func @transform_0(%arg0: i32, %arg1: i32) -> (i32, i32) {
    %c0_i32 = arith.constant 0 : i32
    %c0_i32_0 = arith.constant 0 : i32
    return %arg0, %c0_i32 : i32, i32
  }
  func.func @transform_1(%arg0: i32, %arg1: i32) -> (i32, i32) {
    %c0_i32 = arith.constant 0 : i32
    %c0_i32_0 = arith.constant 0 : i32
    %c0_i32_1 = arith.constant 0 : i32
    return %c0_i32, %c0_i32_0 : i32, i32
  }
  func.func @transform_2(%arg0: i32, %arg1: i32) -> (i32, i32) {
    %c0_i32 = arith.constant 0 : i32
    %c0_i32_0 = arith.constant 0 : i32
    return %c0_i32, %arg1 : i32, i32
  }
  func.func @transform_3(%arg0: i32, %arg1: i32) -> (i32, i32) {
    %c0_i32 = arith.constant 0 : i32
    return %arg0, %arg1 : i32, i32
  }
}

</mosaic_0001>

<llo_original>
// kernel: transformer_forward.13
$region0: #{transformer_forward.13}
  #allocation0 [shape = 'u32[]', space=smem, size = 0x4, offset = 0x4, fixed_abs, tag = 'smem constant byte address 0x4 - core index']
  #allocation1 [shape = 'u32[72,128]{1,0:T(1,128)}', space=vmem, size = 0x9000, scoped, tag = 'internal scratch']
  #allocation2 [shape = 'f32[16,64]{1,0:T(8,128)}', space=vmem, size = 0x2000, scoped, tag = 'scratch operand']
  %s0 = inlined_call_operand.vmem [shape: bf16[16,64], index: 0, kind: input, shape index: {}]
  %s1 = inlined_call_operand.vmem [shape: bf16[64,64], index: 1, kind: input, shape index: {}]
  %s2 = inlined_call_operand.vmem [shape: bf16[16,64], index: 2, kind: output, shape index: {}]
  %s3 = sld [smem:[#allocation0]]
  $region26: #{transformer_forward.13} parent=0
    _
  %s5 = ssub.s32 1, %s3
  %s6 = scalar_select 0, %s5, %s3
  // Predicated region
  $region2: #{transformer_forward.13} parent=0 // pred_check
    _
  $region3: #{transformer_forward.13} parent=0 // pred_check_branch
    %8 = sbr.rel (0) target = $region5
  $region4: #{transformer_forward.13} parent=0 // pred_region
    _
  $region5: #{transformer_forward.13} parent=0 // pred_fallthru
    _
  // Predicated region
  $region6: #{transformer_forward.13} parent=0 // pred_check
    _
  $region7: #{transformer_forward.13} parent=0 // pred_check_branch
    %10 = sbr.rel (0) target = $region9
  $region8: #{transformer_forward.13} parent=0 // pred_region
    _
  $region9: #{transformer_forward.13} parent=0 // pred_fallthru
    _
  %p12 = scmp.eq.s32.totalorder 0, 0
  // Predicated region
  $region10: #{transformer_forward.13} parent=0 // pred_check
    %p13 = pneg %p12
  $region11: #{transformer_forward.13} parent=0 // pred_check_branch
    %15 = sbr.rel (%p13) target = $region13
  $region12: #{transformer_forward.13} parent=0 // pred_region
    %vm16 = vcmask 523264
    %17 = vst.msk [vmem:[#allocation2] sm:$0xff] %vm16, 0.0
    %18 = vst.msk [vmem:[#allocation2 + $0x8] sm:$0xff] %vm16, 0.0
  $region13: #{transformer_forward.13} parent=0 // pred_fallthru
    _
  %v19 = vld [vmem:[#allocation2] sm:$0xff]
  %v20 = vld [vmem:[#allocation2 + $0x8] sm:$0xff]
  %v21 = vld [vmem:[%s0] sm:$0xf]
  %v22 = vld [vmem:[%s0 + $0x4] sm:$0xf]
  %v23 = vld [vmem:[%s1] sm:$0xf]
  %v24 = vld [vmem:[%s1 + $0x4] sm:$0xf]
  %v25 = vld [vmem:[%s1 + $0x8] sm:$0xf]
  %v26 = vld [vmem:[%s1 + $0xc] sm:$0xf]
  %v27 = vld [vmem:[%s1 + $0x10] sm:$0xf]
  %v28 = vld [vmem:[%s1 + $0x14] sm:$0xf]
  %v29 = vld [vmem:[%s1 + $0x18] sm:$0xf]
  %v30 = vld [vmem:[%s1 + $0x1c] sm:$0xf]
  %v33 = vunpack.c.l.b16 %v21
  %v34 = vunpack.c.l.b16 %v22
  %v35 = vpack.c.b16 %v34, %v33
  %v44 = vunpack.c.l.b16 %v23
  %v45 = vunpack.c.l.b16 %v24
  %v46 = vunpack.c.l.b16 %v25
  %v47 = vunpack.c.l.b16 %v26
  %v48 = vunpack.c.l.b16 %v27
  %v49 = vunpack.c.l.b16 %v28
  %v50 = vunpack.c.l.b16 %v29
  %v51 = vunpack.c.l.b16 %v30
  %v52 = vpack.c.b16 %v45, %v44
  %v53 = vpack.c.b16 %v47, %v46
  %v54 = vpack.c.b16 %v49, %v48
  %v55 = vpack.c.b16 %v51, %v50
  %vm60 = vcmask 523264
  %v62 = vsel %vm60, %v35, 0
  %64 = vmatpush.bf16.msra.mxu0 0
  %65 = vmatpush.bf16.msra.mxu0 0
  %66 = vmatpush.bf16.msra.mxu0 0
  %67 = vmatpush.bf16.msra.mxu0 0
  %68 = vmatpush.bf16.msra.mxu0 %v55
  %69 = vmatpush.bf16.msra.mxu0 %v54
  %70 = vmatpush.bf16.msra.mxu0 %v53
  %71 = vmatpush.bf16.msra.mxu0 %v52
  %72 = vmatmul.bf16.gmra.mxu0 %v62
  %v73 = vpop.f32.mrf.mxu0
  %v74 = vadd.f32 0.0, %v73
  %v75 = vpop.f32.mrf.mxu0
  %v76 = vadd.f32 0.0, %v75
  %77 = vdwg.mxu0
  %v78 = vadd.f32 %v19, %v74
  %v79 = vadd.f32 %v20, %v76
  %80 = vst.msk [vmem:[#allocation2] sm:$0xff] %vm60, %v78
  %81 = vst.msk [vmem:[#allocation2 + $0x8] sm:$0xff] %vm60, %v79
  // Predicated region
  $region14: #{transformer_forward.13} parent=0 // pred_check
    %p82 = pneg %p12
  $region15: #{transformer_forward.13} parent=0 // pred_check_branch
    %84 = sbr.rel (%p82) target = $region17
  $region16: #{transformer_forward.13} parent=0 // pred_region
    %v85 = vld [vmem:[#allocation2] sm:$0xff]
    %v86 = vld [vmem:[#allocation2 + $0x8] sm:$0xff]
    %v87 = vpack.c.bf16 %v85, %v85
    %v88 = vpack.c.bf16 %v86, %v86
    %vm89 = vcmask 519168
    %90 = vst.msk [vmem:[%s2] sm:$0xf] %vm89, %v87
    %91 = vst.msk [vmem:[%s2 + $0x4] sm:$0xf] %vm89, %v88
  $region17: #{transformer_forward.13} parent=0 // pred_fallthru
    _
  // Predicated region
  $region18: #{transformer_forward.13} parent=0 // pred_check
    _
  $region19: #{transformer_forward.13} parent=0 // pred_check_branch
    %93 = sbr.rel (0) target = $region21
  $region20: #{transformer_forward.13} parent=0 // pred_region
    _
  $region21: #{transformer_forward.13} parent=0 // pred_fallthru
    _
  // Predicated region
  $region22: #{transformer_forward.13} parent=0 // pred_check
    _
  $region23: #{transformer_forward.13} parent=0 // pred_check_branch
    %95 = sbr.rel (0) target = $region25
  $region24: #{transformer_forward.13} parent=0 // pred_region
    _
  $region25: #{transformer_forward.13} parent=0 // pred_fallthru
    _

// kernel: transformer_forward.11
$region0: #{transformer_forward.11}
  #allocation0 [shape = 'u32[]', space=smem, size = 0x4, offset = 0x4, fixed_abs, tag = 'smem constant byte address 0x4 - core index']
  #allocation1 [shape = 'u32[72,128]{1,0:T(1,128)}', space=vmem, size = 0x9000, scoped, tag = 'internal scratch']
  %s0 = inlined_call_operand.vmem [shape: bf16[16,64], index: 0, kind: input, shape index: {}]
  %s1 = inlined_call_operand.vmem [shape: f32[1,64], index: 1, kind: input, shape index: {}]
  %s2 = inlined_call_operand.vmem [shape: bf16[64,192], index: 2, kind: input, shape index: {}]
  %s3 = inlined_call_operand.vmem [shape: bf16[16,192], index: 3, kind: output, shape index: {}]
  %s4 = sld [smem:[#allocation0]]
  $region22: #{transformer_forward.11} parent=0
    _
  %s6 = ssub.s32 1, %s4
  %s7 = scalar_select 0, %s6, %s4
  // Predicated region
  $region2: #{transformer_forward.11} parent=0 // pred_check
    _
  $region3: #{transformer_forward.11} parent=0 // pred_check_branch
    %9 = sbr.rel (0) target = $region5
  $region4: #{transformer_forward.11} parent=0 // pred_region
    _
  $region5: #{transformer_forward.11} parent=0 // pred_fallthru
    _
  // Predicated region
  $region6: #{transformer_forward.11} parent=0 // pred_check
    _
  $region7: #{transformer_forward.11} parent=0 // pred_check_branch
    %11 = sbr.rel (0) target = $region9
  $region8: #{transformer_forward.11} parent=0 // pred_region
    _
  $region9: #{transformer_forward.11} parent=0 // pred_fallthru
    _
  // Predicated region
  $region10: #{transformer_forward.11} parent=0 // pred_check
    _
  $region11: #{transformer_forward.11} parent=0 // pred_check_branch
    %13 = sbr.rel (0) target = $region13
  $region12: #{transformer_forward.11} parent=0 // pred_region
    _
  $region13: #{transformer_forward.11} parent=0 // pred_fallthru
    _
  %v15 = vld [vmem:[%s0] sm:$0xf]
  %v16 = vld [vmem:[%s0 + $0x4] sm:$0xf]
  %v17 = vunpack.c.l.bf16 %v15
  %v18 = vunpack.c.l.bf16 %v16
  %v19 = vmul.f32 %v17, %v17
  %v20 = vmul.f32 %v18, %v18
  %vm21 = vcmask 523264
  %v22 = vsel %vm21, %v19, 0.0
  %23 = vadd.xlane.f32.xlu0 %v22
  %v24 = vpop.xlane.xlu0 %23
  %v25 = vsel %vm21, %v20, 0.0
  %26 = vadd.xlane.f32.xlu0 %v25
  %v27 = vpop.xlane.xlu0 %26
  %v28 = vrcp.pop 64.0
  %v29 = vmul.f32 64.0, %v28
  %v30 = vsub.f32 1.0, %v29
  %v31 = vmul.f32 %v28, %v30
  %v32 = vadd.f32 %v28, %v31
  %vm33 = vweird.f32 %v28
  %v34 = vsel %vm33, %v28, %v32
  %v35 = vmul.f32 %v24, %v34
  %v36 = vmul.f32 %v27, %v34
  %v37 = vadd.f32 %v35, 1e-05
  %v38 = vadd.f32 %v36, 1e-05
  %v39 = vrsqrt.pop %v37
  %v40 = vmul.f32 %v39, %v37
  %v41 = vmul.f32 %v40, %v39
  %v42 = vmul.f32 0.5, %v41
  %v43 = vsub.f32 1.5, %v42
  %v44 = vmul.f32 %v39, %v43
  %vm45 = vweird.f32 %v37
  %vm46 = vweird.f32 %v39
  %vm47 = vmor %vm45, %vm46
  %v48 = vsel %vm47, %v39, %v44
  %v49 = vrsqrt.pop %v38
  %v50 = vmul.f32 %v49, %v38
  %v51 = vmul.f32 %v50, %v49
  %v52 = vmul.f32 0.5, %v51
  %v53 = vsub.f32 1.5, %v52
  %v54 = vmul.f32 %v49, %v53
  %vm55 = vweird.f32 %v38
  %vm56 = vweird.f32 %v49
  %vm57 = vmor %vm55, %vm56
  %v58 = vsel %vm57, %v49, %v54
  %v59 = vmul.f32 %v17, %v48
  %v60 = vmul.f32 %v18, %v58
  %v61 = vld [vmem:[%s1] sm:$0x1]
  %v63 = vperm.slane %v61, 0
  %v65 = vmul.f32 %v59, %v63
  %v66 = vmul.f32 %v60, %v63
  %v67 = vpack.c.bf16 %v66, %v65
  %v68 = vld [vmem:[%s2] sm:$0xff]
  %v69 = vld [vmem:[%s2 + $0x8] sm:$0xff]
  %v70 = vld [vmem:[%s2 + $0x10] sm:$0xff]
  %v71 = vld [vmem:[%s2 + $0x18] sm:$0xff]
  %v72 = vld [vmem:[%s2 + $0x20] sm:$0xff]
  %v73 = vld [vmem:[%s2 + $0x28] sm:$0xff]
  %v74 = vld [vmem:[%s2 + $0x30] sm:$0xff]
  %v75 = vld [vmem:[%s2 + $0x38] sm:$0xff]
  %v84 = vunpack.c.l.b16 %v68
  %v85 = vunpack.c.h.b16 %v68
  %v86 = vunpack.c.l.b16 %v69
  %v87 = vunpack.c.h.b16 %v69
  %v88 = vunpack.c.l.b16 %v70
  %v89 = vunpack.c.h.b16 %v70
  %v90 = vunpack.c.l.b16 %v71
  %v91 = vunpack.c.h.b16 %v71
  %v92 = vunpack.c.l.b16 %v72
  %v93 = vunpack.c.h.b16 %v72
  %v94 = vunpack.c.l.b16 %v73
  %v95 = vunpack.c.h.b16 %v73
  %v96 = vunpack.c.l.b16 %v74
  %v97 = vunpack.c.h.b16 %v74
  %v98 = vunpack.c.l.b16 %v75
  %v99 = vunpack.c.h.b16 %v75
  %v100 = vpack.c.b16 %v86, %v84
  %v101 = vpack.c.b16 %v87, %v85
  %v102 = vpack.c.b16 %v90, %v88
  %v103 = vpack.c.b16 %v91, %v89
  %v104 = vpack.c.b16 %v94, %v92
  %v105 = vpack.c.b16 %v95, %v93
  %v106 = vpack.c.b16 %v98, %v96
  %v107 = vpack.c.b16 %v99, %v97
  %v117 = vsel %vm21, %v67, 0
  %119 = vmatpush.bf16.msra.mxu0 0
  %120 = vmatpush.bf16.msra.mxu0 0
  %121 = vmatpush.bf16.msra.mxu0 0
  %122 = vmatpush.bf16.msra.mxu0 0
  %123 = vmatpush.bf16.msra.mxu0 %v106
  %124 = vmatpush.bf16.msra.mxu0 %v104
  %125 = vmatpush.bf16.msra.mxu0 %v102
  %126 = vmatpush.bf16.msra.mxu0 %v100
  %127 = vmatmul.bf16.gmra.mxu0 %v117
  %v128 = vpop.f32.mrf.mxu0
  %v129 = vadd.f32 0.0, %v128
  %v130 = vpop.f32.mrf.mxu0
  %v131 = vadd.f32 0.0, %v130
  %132 = vdwg.mxu0
  %133 = vmatpush.bf16.msra.mxu0 0
  %134 = vmatpush.bf16.msra.mxu0 0
  %135 = vmatpush.bf16.msra.mxu0 0
  %136 = vmatpush.bf16.msra.mxu0 0
  %137 = vmatpush.bf16.msra.mxu0 %v107
  %138 = vmatpush.bf16.msra.mxu0 %v105
  %139 = vmatpush.bf16.msra.mxu0 %v103
  %140 = vmatpush.bf16.msra.mxu0 %v101
  %141 = vmatmul.bf16.gmra.mxu0 %v117
  %v142 = vpop.f32.mrf.mxu0
  %v143 = vadd.f32 0.0, %v142
  %v144 = vpop.f32.mrf.mxu0
  %v145 = vadd.f32 0.0, %v144
  %146 = vdwg.mxu0
  %v147 = vpack.c.bf16 %v143, %v129
  %v148 = vpack.c.bf16 %v145, %v131
  %vm149 = vcmask 1043456
  %vm150 = vcmask 523268
  %vm151 = vmor %vm150, %vm149
  %152 = vst.msk [vmem:[%s3] sm:$0xff] %vm151, %v147
  %153 = vst.msk [vmem:[%s3 + $0x8] sm:$0xff] %vm151, %v148
  // Predicated region
  $region14: #{transformer_forward.11} parent=0 // pred_check
    _
  $region15: #{transformer_forward.11} parent=0 // pred_check_branch
    %155 = sbr.rel (0) target = $region17
  $region16: #{transformer_forward.11} parent=0 // pred_region
    _
  $region17: #{transformer_forward.11} parent=0 // pred_fallthru
    _
  // Predicated region
  $region18: #{transformer_forward.11} parent=0 // pred_check
    _
  $region19: #{transformer_forward.11} parent=0 // pred_check_branch
    %157 = sbr.rel (0) target = $region21
  $region20: #{transformer_forward.11} parent=0 // pred_region
    _
  $region21: #{transformer_forward.11} parent=0 // pred_fallthru
    _

// kernel: transformer_forward.14
$region0: #{transformer_forward.14}
  #allocation0 [shape = 'u32[]', space=smem, size = 0x4, offset = 0x4, fixed_abs, tag = 'smem constant byte address 0x4 - core index']
  #allocation1 [shape = 'u32[72,128]{1,0:T(1,128)}', space=vmem, size = 0x9000, scoped, tag = 'internal scratch']
  %s0 = inlined_call_operand.vmem [shape: bf16[16,64], index: 0, kind: input, shape index: {}]
  %s1 = inlined_call_operand.vmem [shape: f32[1,64], index: 1, kind: input, shape index: {}]
  %s2 = inlined_call_operand.vmem [shape: bf16[64,192], index: 2, kind: input, shape index: {}]
  %s3 = inlined_call_operand.vmem [shape: bf16[64,192], index: 3, kind: input, shape index: {}]
  %s4 = inlined_call_operand.vmem [shape: bf16[16,192], index: 4, kind: output, shape index: {}]
  %s5 = sld [smem:[#allocation0]]
  $region26: #{transformer_forward.14} parent=0
    _
  %s7 = ssub.s32 1, %s5
  %s8 = scalar_select 0, %s7, %s5
  // Predicated region
  $region2: #{transformer_forward.14} parent=0 // pred_check
    _
  $region3: #{transformer_forward.14} parent=0 // pred_check_branch
    %10 = sbr.rel (0) target = $region5
  $region4: #{transformer_forward.14} parent=0 // pred_region
    _
  $region5: #{transformer_forward.14} parent=0 // pred_fallthru
    _
  // Predicated region
  $region6: #{transformer_forward.14} parent=0 // pred_check
    _
  $region7: #{transformer_forward.14} parent=0 // pred_check_branch
    %12 = sbr.rel (0) target = $region9
  $region8: #{transformer_forward.14} parent=0 // pred_region
    _
  $region9: #{transformer_forward.14} parent=0 // pred_fallthru
    _
  // Predicated region
  $region10: #{transformer_forward.14} parent=0 // pred_check
    _
  $region11: #{transformer_forward.14} parent=0 // pred_check_branch
    %14 = sbr.rel (0) target = $region13
  $region12: #{transformer_forward.14} parent=0 // pred_region
    _
  $region13: #{transformer_forward.14} parent=0 // pred_fallthru
    _
  // Predicated region
  $region14: #{transformer_forward.14} parent=0 // pred_check
    _
  $region15: #{transformer_forward.14} parent=0 // pred_check_branch
    %16 = sbr.rel (0) target = $region17
  $region16: #{transformer_forward.14} parent=0 // pred_region
    _
  $region17: #{transformer_forward.14} parent=0 // pred_fallthru
    _
  %v18 = vld [vmem:[%s0] sm:$0xf]
  %v19 = vld [vmem:[%s0 + $0x4] sm:$0xf]
  %v20 = vunpack.c.l.bf16 %v18
  %v21 = vunpack.c.l.bf16 %v19
  %v22 = vmul.f32 %v20, %v20
  %v23 = vmul.f32 %v21, %v21
  %vm24 = vcmask 523264
  %v25 = vsel %vm24, %v22, 0.0
  %26 = vadd.xlane.f32.xlu0 %v25
  %v27 = vpop.xlane.xlu0 %26
  %v28 = vsel %vm24, %v23, 0.0
  %29 = vadd.xlane.f32.xlu0 %v28
  %v30 = vpop.xlane.xlu0 %29
  %v31 = vrcp.pop 64.0
  %v32 = vmul.f32 64.0, %v31
  %v33 = vsub.f32 1.0, %v32
  %v34 = vmul.f32 %v31, %v33
  %v35 = vadd.f32 %v31, %v34
  %vm36 = vweird.f32 %v31
  %v37 = vsel %vm36, %v31, %v35
  %v38 = vmul.f32 %v27, %v37
  %v39 = vmul.f32 %v30, %v37
  %v40 = vadd.f32 %v38, 1e-05
  %v41 = vadd.f32 %v39, 1e-05
  %v42 = vrsqrt.pop %v40
  %v43 = vmul.f32 %v42, %v40
  %v44 = vmul.f32 %v43, %v42
  %v45 = vmul.f32 0.5, %v44
  %v46 = vsub.f32 1.5, %v45
  %v47 = vmul.f32 %v42, %v46
  %vm48 = vweird.f32 %v40
  %vm49 = vweird.f32 %v42
  %vm50 = vmor %vm48, %vm49
  %v51 = vsel %vm50, %v42, %v47
  %v52 = vrsqrt.pop %v41
  %v53 = vmul.f32 %v52, %v41
  %v54 = vmul.f32 %v53, %v52
  %v55 = vmul.f32 0.5, %v54
  %v56 = vsub.f32 1.5, %v55
  %v57 = vmul.f32 %v52, %v56
  %vm58 = vweird.f32 %v41
  %vm59 = vweird.f32 %v52
  %vm60 = vmor %vm58, %vm59
  %v61 = vsel %vm60, %v52, %v57
  %v62 = vmul.f32 %v20, %v51
  %v63 = vmul.f32 %v21, %v61
  %v64 = vld [vmem:[%s1] sm:$0x1]
  %v66 = vperm.slane %v64, 0
  %v68 = vmul.f32 %v62, %v66
  %v69 = vmul.f32 %v63, %v66
  %v70 = vpack.c.bf16 %v69, %v68
  %v71 = vld [vmem:[%s2] sm:$0xff]
  %v72 = vld [vmem:[%s2 + $0x8] sm:$0xff]
  %v73 = vld [vmem:[%s2 + $0x10] sm:$0xff]
  %v74 = vld [vmem:[%s2 + $0x18] sm:$0xff]
  %v75 = vld [vmem:[%s2 + $0x20] sm:$0xff]
  %v76 = vld [vmem:[%s2 + $0x28] sm:$0xff]
  %v77 = vld [vmem:[%s2 + $0x30] sm:$0xff]
  %v78 = vld [vmem:[%s2 + $0x38] sm:$0xff]
  %v87 = vunpack.c.l.b16 %v71
  %v88 = vunpack.c.h.b16 %v71
  %v89 = vunpack.c.l.b16 %v72
  %v90 = vunpack.c.h.b16 %v72
  %v91 = vunpack.c.l.b16 %v73
  %v92 = vunpack.c.h.b16 %v73
  %v93 = vunpack.c.l.b16 %v74
  %v94 = vunpack.c.h.b16 %v74
  %v95 = vunpack.c.l.b16 %v75
  %v96 = vunpack.c.h.b16 %v75
  %v97 = vunpack.c.l.b16 %v76
  %v98 = vunpack.c.h.b16 %v76
  %v99 = vunpack.c.l.b16 %v77
  %v100 = vunpack.c.h.b16 %v77
  %v101 = vunpack.c.l.b16 %v78
  %v102 = vunpack.c.h.b16 %v78
  %v103 = vpack.c.b16 %v89, %v87
  %v104 = vpack.c.b16 %v90, %v88
  %v105 = vpack.c.b16 %v93, %v91
  %v106 = vpack.c.b16 %v94, %v92
  %v107 = vpack.c.b16 %v97, %v95
  %v108 = vpack.c.b16 %v98, %v96
  %v109 = vpack.c.b16 %v101, %v99
  %v110 = vpack.c.b16 %v102, %v100
  %v120 = vsel %vm24, %v70, 0
  %122 = vmatpush.bf16.msra.mxu0 0
  %123 = vmatpush.bf16.msra.mxu0 0
  %124 = vmatpush.bf16.msra.mxu0 0
  %125 = vmatpush.bf16.msra.mxu0 0
  %126 = vmatpush.bf16.msra.mxu0 %v109
  %127 = vmatpush.bf16.msra.mxu0 %v107
  %128 = vmatpush.bf16.msra.mxu0 %v105
  %129 = vmatpush.bf16.msra.mxu0 %v103
  %130 = vmatmul.bf16.gmra.mxu0 %v120
  %v131 = vpop.f32.mrf.mxu0
  %v132 = vadd.f32 0.0, %v131
  %v133 = vpop.f32.mrf.mxu0
  %v134 = vadd.f32 0.0, %v133
  %135 = vdwg.mxu0
  %136 = vmatpush.bf16.msra.mxu0 0
  %137 = vmatpush.bf16.msra.mxu0 0
  %138 = vmatpush.bf16.msra.mxu0 0
  %139 = vmatpush.bf16.msra.mxu0 0
  %140 = vmatpush.bf16.msra.mxu0 %v110
  %141 = vmatpush.bf16.msra.mxu0 %v108
  %142 = vmatpush.bf16.msra.mxu0 %v106
  %143 = vmatpush.bf16.msra.mxu0 %v104
  %144 = vmatmul.bf16.gmra.mxu0 %v120
  %v145 = vpop.f32.mrf.mxu0
  %v146 = vadd.f32 0.0, %v145
  %v147 = vpop.f32.mrf.mxu0
  %v148 = vadd.f32 0.0, %v147
  %149 = vdwg.mxu0
  %v150 = vld [vmem:[%s3] sm:$0xff]
  %v151 = vld [vmem:[%s3 + $0x8] sm:$0xff]
  %v152 = vld [vmem:[%s3 + $0x10] sm:$0xff]
  %v153 = vld [vmem:[%s3 + $0x18] sm:$0xff]
  %v154 = vld [vmem:[%s3 + $0x20] sm:$0xff]
  %v155 = vld [vmem:[%s3 + $0x28] sm:$0xff]
  %v156 = vld [vmem:[%s3 + $0x30] sm:$0xff]
  %v157 = vld [vmem:[%s3 + $0x38] sm:$0xff]
  %v166 = vunpack.c.l.b16 %v150
  %v167 = vunpack.c.h.b16 %v150
  %v168 = vunpack.c.l.b16 %v151
  %v169 = vunpack.c.h.b16 %v151
  %v170 = vunpack.c.l.b16 %v152
  %v171 = vunpack.c.h.b16 %v152
  %v172 = vunpack.c.l.b16 %v153
  %v173 = vunpack.c.h.b16 %v153
  %v174 = vunpack.c.l.b16 %v154
  %v175 = vunpack.c.h.b16 %v154
  %v176 = vunpack.c.l.b16 %v155
  %v177 = vunpack.c.h.b16 %v155
  %v178 = vunpack.c.l.b16 %v156
  %v179 = vunpack.c.h.b16 %v156
  %v180 = vunpack.c.l.b16 %v157
  %v181 = vunpack.c.h.b16 %v157
  %v182 = vpack.c.b16 %v168, %v166
  %v183 = vpack.c.b16 %v169, %v167
  %v184 = vpack.c.b16 %v172, %v170
  %v185 = vpack.c.b16 %v173, %v171
  %v186 = vpack.c.b16 %v176, %v174
  %v187 = vpack.c.b16 %v177, %v175
  %v188 = vpack.c.b16 %v180, %v178
  %v189 = vpack.c.b16 %v181, %v179
  %198 = vmatpush.bf16.msra.mxu0 0
  %199 = vmatpush.bf16.msra.mxu0 0
  %200 = vmatpush.bf16.msra.mxu0 0
  %201 = vmatpush.bf16.msra.mxu0 0
  %202 = vmatpush.bf16.msra.mxu0 %v188
  %203 = vmatpush.bf16.msra.mxu0 %v186
  %204 = vmatpush.bf16.msra.mxu0 %v184
  %205 = vmatpush.bf16.msra.mxu0 %v182
  %206 = vmatmul.bf16.gmra.mxu0 %v120
  %v207 = vpop.f32.mrf.mxu0
  %v208 = vadd.f32 0.0, %v207
  %v209 = vpop.f32.mrf.mxu0
  %v210 = vadd.f32 0.0, %v209
  %211 = vdwg.mxu0
  %212 = vmatpush.bf16.msra.mxu0 0
  %213 = vmatpush.bf16.msra.mxu0 0
  %214 = vmatpush.bf16.msra.mxu0 0
  %215 = vmatpush.bf16.msra.mxu0 0
  %216 = vmatpush.bf16.msra.mxu0 %v189
  %217 = vmatpush.bf16.msra.mxu0 %v187
  %218 = vmatpush.bf16.msra.mxu0 %v185
  %219 = vmatpush.bf16.msra.mxu0 %v183
  %220 = vmatmul.bf16.gmra.mxu0 %v120
  %v221 = vpop.f32.mrf.mxu0
  %v222 = vadd.f32 0.0, %v221
  %v223 = vpop.f32.mrf.mxu0
  %v224 = vadd.f32 0.0, %v223
  %225 = vdwg.mxu0
  %v226 = vxor.u32 %v132, 2147483648
  %v227 = vxor.u32 %v146, 2147483648
  %v228 = vxor.u32 %v134, 2147483648
  %v229 = vxor.u32 %v148, 2147483648
  %v230 = vmul.f32 %v226, 1.442695
  %v231 = vpow.pop %v230
  %v232 = vmul.f32 %v227, 1.442695
  %v233 = vpow.pop %v232
  %v234 = vmul.f32 %v228, 1.442695
  %v235 = vpow.pop %v234
  %v236 = vmul.f32 %v229, 1.442695
  %v237 = vpow.pop %v236
  %v238 = vadd.f32 %v231, 1.0
  %v239 = vadd.f32 %v233, 1.0
  %v240 = vadd.f32 %v235, 1.0
  %v241 = vadd.f32 %v237, 1.0
  %v242 = vrcp.pop %v238
  %v243 = vmul.f32 %v238, %v242
  %v244 = vsub.f32 1.0, %v243
  %v245 = vmul.f32 %v242, %v244
  %v246 = vadd.f32 %v242, %v245
  %vm247 = vweird.f32 %v238
  %vm248 = vweird.f32 %v242
  %vm249 = vmor %vm247, %vm248
  %v250 = vsel %vm249, %v242, %v246
  %v251 = vand.u32 2147483647, %v238
  %vm252 = vcmp.eq.f32.partialorder %v251, 8.507059e+37
  %v253 = vand.u32 %v238, 2147483648
  %v254 = vor.u32 1.1754944e-38, %v253
  %v255 = vsel %vm252, %v254, %v250
  %v256 = vmul.f32 1.0, %v255
  %v257 = vrcp.pop %v239
  %v258 = vmul.f32 %v239, %v257
  %v259 = vsub.f32 1.0, %v258
  %v260 = vmul.f32 %v257, %v259
  %v261 = vadd.f32 %v257, %v260
  %vm262 = vweird.f32 %v239
  %vm263 = vweird.f32 %v257
  %vm264 = vmor %vm262, %vm263
  %v265 = vsel %vm264, %v257, %v261
  %v266 = vand.u32 2147483647, %v239
  %vm267 = vcmp.eq.f32.partialorder %v266, 8.507059e+37
  %v268 = vand.u32 %v239, 2147483648
  %v269 = vor.u32 1.1754944e-38, %v268
  %v270 = vsel %vm267, %v269, %v265
  %v271 = vmul.f32 1.0, %v270
  %v272 = vrcp.pop %v240
  %v273 = vmul.f32 %v240, %v272
  %v274 = vsub.f32 1.0, %v273
  %v275 = vmul.f32 %v272, %v274
  %v276 = vadd.f32 %v272, %v275
  %vm277 = vweird.f32 %v240
  %vm278 = vweird.f32 %v272
  %vm279 = vmor %vm277, %vm278
  %v280 = vsel %vm279, %v272, %v276
  %v281 = vand.u32 2147483647, %v240
  %vm282 = vcmp.eq.f32.partialorder %v281, 8.507059e+37
  %v283 = vand.u32 %v240, 2147483648
  %v284 = vor.u32 1.1754944e-38, %v283
  %v285 = vsel %vm282, %v284, %v280
  %v286 = vmul.f32 1.0, %v285
  %v287 = vrcp.pop %v241
  %v288 = vmul.f32 %v241, %v287
  %v289 = vsub.f32 1.0, %v288
  %v290 = vmul.f32 %v287, %v289
  %v291 = vadd.f32 %v287, %v290
  %vm292 = vweird.f32 %v241
  %vm293 = vweird.f32 %v287
  %vm294 = vmor %vm292, %vm293
  %v295 = vsel %vm294, %v287, %v291
  %v296 = vand.u32 2147483647, %v241
  %vm297 = vcmp.eq.f32.partialorder %v296, 8.507059e+37
  %v298 = vand.u32 %v241, 2147483648
  %v299 = vor.u32 1.1754944e-38, %v298
  %v300 = vsel %vm297, %v299, %v295
  %v301 = vmul.f32 1.0, %v300
  %v302 = vmul.f32 %v132, %v256
  %v303 = vmul.f32 %v146, %v271
  %v304 = vmul.f32 %v134, %v286
  %v305 = vmul.f32 %v148, %v301
  %v306 = vmul.f32 %v302, %v208
  %v307 = vmul.f32 %v303, %v222
  %v308 = vmul.f32 %v304, %v210
  %v309 = vmul.f32 %v305, %v224
  %v310 = vpack.c.bf16 %v307, %v306
  %v311 = vpack.c.bf16 %v309, %v308
  %vm312 = vcmask 1043456
  %vm313 = vcmask 523268
  %vm314 = vmor %vm313, %vm312
  %315 = vst.msk [vmem:[%s4] sm:$0xff] %vm314, %v310
  %316 = vst.msk [vmem:[%s4 + $0x8] sm:$0xff] %vm314, %v311
  // Predicated region
  $region18: #{transformer_forward.14} parent=0 // pred_check
    _
  $region19: #{transformer_forward.14} parent=0 // pred_check_branch
    %318 = sbr.rel (0) target = $region21
  $region20: #{transformer_forward.14} parent=0 // pred_region
    _
  $region21: #{transformer_forward.14} parent=0 // pred_fallthru
    _
  // Predicated region
  $region22: #{transformer_forward.14} parent=0 // pred_check
    _
  $region23: #{transformer_forward.14} parent=0 // pred_check_branch
    %320 = sbr.rel (0) target = $region25
  $region24: #{transformer_forward.14} parent=0 // pred_region
    _
  $region25: #{transformer_forward.14} parent=0 // pred_fallthru
    _

// kernel: transformer_forward.12
$region0: #{transformer_forward.12}
  #allocation0 [shape = 'u32[]', space=smem, size = 0x4, offset = 0x4, fixed_abs, tag = 'smem constant byte address 0x4 - core index']
  #allocation1 [shape = 'u32[72,128]{1,0:T(1,128)}', space=vmem, size = 0x9000, scoped, tag = 'internal scratch']
  #allocation2 [shape = 'f32[4,8,1]{2,1,0:T(8,128)}', space=vmem, size = 0x4000, scoped, tag = 'scratch operand']
  #allocation3 [shape = 'f32[4,8,1]{2,1,0:T(8,128)}', space=vmem, size = 0x4000, scoped, tag = 'scratch operand']
  #allocation4 [shape = 'f32[4,8,16]{2,1,0:T(8,128)}', space=vmem, size = 0x4000, scoped, tag = 'scratch operand']
  %s0 = inlined_call_operand.vmem [shape: bf16[2,4,8,16], index: 0, kind: input, shape index: {}]
  %s1 = inlined_call_operand.vmem [shape: bf16[2,4,8,16], index: 1, kind: input, shape index: {}]
  %s2 = inlined_call_operand.vmem [shape: bf16[2,4,8,16], index: 2, kind: input, shape index: {}]
  %s3 = inlined_call_operand.vmem [shape: f32[8,8], index: 3, kind: input, shape index: {}, may-alias: {3,5}]
  %s4 = inlined_call_operand.vmem [shape: f32[8,8], index: 4, kind: input, shape index: {}, may-alias: {4,6}]
  %s5 = inlined_call_operand.vmem [shape: f32[8,8], index: 5, kind: input, shape index: {}, may-alias: {3,5}]
  %s6 = inlined_call_operand.vmem [shape: f32[8,8], index: 6, kind: input, shape index: {}, may-alias: {4,6}]
  %s7 = inlined_call_operand.vmem [shape: bf16[2,4,8,16], index: 7, kind: output, shape index: {}]
  %s8 = sld [smem:[#allocation0]]
  $region69: #{transformer_forward.12} parent=0
    _
  %s10 = ssub.s32 1, %s8
  %s11 = scalar_select 0, %s10, %s8
  loop: start=0, step=1, limit=4
  $region2: #{transformer_forward.12} parent=0 // loop_pre_header
    _
  $region3: #{transformer_forward.12} parent=0 // loop_header
    %s13 = sphi 0, %s17
    %p14 = scmp.ge.s32.totalorder %s13, 4
    %s20 = sphi 0, %s39
    %s21 = sphi 0, %s35
    %s22 = sphi 0, %s31
    %s23 = sphi 0, %s20
    %s24 = sphi 0, %s21
    %s25 = sphi 0, %s22
    %s26 = sphi 0, %s23
    %s27 = sphi 0, %s24
    %s28 = sphi 0, %s25
    %s44 = sphi 0, %s46
    %s47 = sphi 0, %s44
    %s48 = sphi 0, %s47
    %s64 = sphi 0, %s48
    %s72 = sphi 0, %s74
    %s75 = sphi 0, %s72
    %s76 = sphi 0, %s75
    %s92 = sphi 0, %s76
    %s100 = sphi 0, %s102
    %s103 = sphi 0, %s100
    %s104 = sphi 0, %s103
    %s120 = sphi 0, %s104
    %s126 = sphi 0, %s128
    %s129 = sphi 0, %s126
    %s130 = sphi 0, %s129
    %s146 = sphi 0, %s130
    %s152 = sphi 0, %s154
    %s155 = sphi 0, %s152
    %s156 = sphi 0, %s155
    %s172 = sphi 0, %s156
    %s178 = sphi 0, %s180
    %s181 = sphi 0, %s178
    %s182 = sphi 0, %s181
    %s198 = sphi 0, %s182
    %s204 = sphi 0, %s206
    %s207 = sphi 0, %s204
    %s208 = sphi 0, %s207
    %s224 = sphi 0, %s208
    %s232 = sphi 0, %s234
    %s235 = sphi 0, %s232
    %s236 = sphi 0, %s235
    %s252 = sphi 0, %s236
  $region4: #{transformer_forward.12} parent=0 // loop_header_branch
    %16 = sbr.rel (%p14) target = $region8
  $region5: #{transformer_forward.12} parent=0 // loop_body
    %s18 = ssub.s32 %s13, 1
    %s19 = ssub.s32 %s13, 2
    %s29 = sadd.s32 1, %s22
    %p30 = scmp.ge.s32.totalorder %s29, 1
    %s31 = scalar_select %p30, 0, %s29
    %s32 = sadd.s32 1, %s21
    %s33 = scalar_select %p30, %s32, %s21
    %p34 = scmp.ge.s32.totalorder %s33, 1
    %s35 = scalar_select %p34, 0, %s33
    %s36 = sadd.s32 1, %s20
    %s37 = scalar_select %p34, %s36, %s20
    %p38 = scmp.ge.s32.totalorder %s37, 2
    %s39 = scalar_select %p38, 0, %s37
    %s40 = ssub.s32 %s20, %s39
    %s41 = ssub.s32 %s21, %s35
    %s42 = sor.u32 %s40, %s41
    %p43 = scmp.eq.s32.totalorder %s42, 0
    %s45 = sadd.s32 %s44, 1
    %s46 = scalar_select %p43, %s44, %s45
    %p49 = pneg %p43
    %p50 = scmp.eq.s32.totalorder %s13, 1
    %p51 = por %p49, %p50
    %p52 = scmp.ne.s32.totalorder %s44, %s47
    %p53 = scmp.eq.s32.totalorder %s13, 0
    %p54 = por %p52, %p53
    %p55 = scmp.ne.s32.totalorder %s44, %s47
    %p56 = scmp.eq.s32.totalorder %s18, 1
    %p57 = por %p55, %p56
    %p58 = scmp.ne.s32.totalorder %s47, %s48
    %p59 = scmp.eq.s32.totalorder %s18, 0
    %p60 = por %p58, %p59
    %p61 = scmp.ne.s32.totalorder %s47, %s48
    %p62 = scmp.eq.s32.totalorder %s19, 1
    %p63 = por %p61, %p62
    %p65 = scmp.ne.s32.totalorder %s48, %s64
    %p66 = scmp.eq.s32.totalorder %s19, 0
    %p67 = por %p65, %p66
    %s68 = ssub.s32 %s20, %s39
    %s69 = ssub.s32 %s22, %s31
    %s70 = sor.u32 %s68, %s69
    %p71 = scmp.eq.s32.totalorder %s70, 0
    %s73 = sadd.s32 %s72, 1
    %s74 = scalar_select %p71, %s72, %s73
    %p77 = pneg %p71
    %p78 = scmp.eq.s32.totalorder %s13, 1
    %p79 = por %p77, %p78
    %p80 = scmp.ne.s32.totalorder %s72, %s75
    %p81 = scmp.eq.s32.totalorder %s13, 0
    %p82 = por %p80, %p81
    %p83 = scmp.ne.s32.totalorder %s72, %s75
    %p84 = scmp.eq.s32.totalorder %s18, 1
    %p85 = por %p83, %p84
    %p86 = scmp.ne.s32.totalorder %s75, %s76
    %p87 = scmp.eq.s32.totalorder %s18, 0
    %p88 = por %p86, %p87
    %p89 = scmp.ne.s32.totalorder %s75, %s76
    %p90 = scmp.eq.s32.totalorder %s19, 1
    %p91 = por %p89, %p90
    %p93 = scmp.ne.s32.totalorder %s76, %s92
    %p94 = scmp.eq.s32.totalorder %s19, 0
    %p95 = por %p93, %p94
    %s96 = ssub.s32 %s20, %s39
    %s97 = ssub.s32 %s22, %s31
    %s98 = sor.u32 %s96, %s97
    %p99 = scmp.eq.s32.totalorder %s98, 0
    %s101 = sadd.s32 %s100, 1
    %s102 = scalar_select %p99, %s100, %s101
    %p105 = pneg %p99
    %p106 = scmp.eq.s32.totalorder %s13, 1
    %p107 = por %p105, %p106
    %p108 = scmp.ne.s32.totalorder %s100, %s103
    %p109 = scmp.eq.s32.totalorder %s13, 0
    %p110 = por %p108, %p109
    %p111 = scmp.ne.s32.totalorder %s100, %s103
    %p112 = scmp.eq.s32.totalorder %s18, 1
    %p113 = por %p111, %p112
    %p114 = scmp.ne.s32.totalorder %s103, %s104
    %p115 = scmp.eq.s32.totalorder %s18, 0
    %p116 = por %p114, %p115
    %p117 = scmp.ne.s32.totalorder %s103, %s104
    %p118 = scmp.eq.s32.totalorder %s19, 1
    %p119 = por %p117, %p118
    %p121 = scmp.ne.s32.totalorder %s104, %s120
    %p122 = scmp.eq.s32.totalorder %s19, 0
    %p123 = por %p121, %p122
    %s124 = ssub.s32 %s21, %s35
    %p125 = scmp.eq.s32.totalorder %s124, 0
    %s127 = sadd.s32 %s126, 1
    %s128 = scalar_select %p125, %s126, %s127
    %p131 = pneg %p125
    %p132 = scmp.eq.s32.totalorder %s13, 1
    %p133 = por %p131, %p132
    %p134 = scmp.ne.s32.totalorder %s126, %s129
    %p135 = scmp.eq.s32.totalorder %s13, 0
    %p136 = por %p134, %p135
    %p137 = scmp.ne.s32.totalorder %s126, %s129
    %p138 = scmp.eq.s32.totalorder %s18, 1
    %p139 = por %p137, %p138
    %p140 = scmp.ne.s32.totalorder %s129, %s130
    %p141 = scmp.eq.s32.totalorder %s18, 0
    %p142 = por %p140, %p141
    %p143 = scmp.ne.s32.totalorder %s129, %s130
    %p144 = scmp.eq.s32.totalorder %s19, 1
    %p145 = por %p143, %p144
    %p147 = scmp.ne.s32.totalorder %s130, %s146
    %p148 = scmp.eq.s32.totalorder %s19, 0
    %p149 = por %p147, %p148
    %s150 = ssub.s32 %s21, %s35
    %p151 = scmp.eq.s32.totalorder %s150, 0
    %s153 = sadd.s32 %s152, 1
    %s154 = scalar_select %p151, %s152, %s153
    %p157 = pneg %p151
    %p158 = scmp.eq.s32.totalorder %s13, 1
    %p159 = por %p157, %p158
    %p160 = scmp.ne.s32.totalorder %s152, %s155
    %p161 = scmp.eq.s32.totalorder %s13, 0
    %p162 = por %p160, %p161
    %p163 = scmp.ne.s32.totalorder %s152, %s155
    %p164 = scmp.eq.s32.totalorder %s18, 1
    %p165 = por %p163, %p164
    %p166 = scmp.ne.s32.totalorder %s155, %s156
    %p167 = scmp.eq.s32.totalorder %s18, 0
    %p168 = por %p166, %p167
    %p169 = scmp.ne.s32.totalorder %s155, %s156
    %p170 = scmp.eq.s32.totalorder %s19, 1
    %p171 = por %p169, %p170
    %p173 = scmp.ne.s32.totalorder %s156, %s172
    %p174 = scmp.eq.s32.totalorder %s19, 0
    %p175 = por %p173, %p174
    %s176 = ssub.s32 %s22, %s31
    %p177 = scmp.eq.s32.totalorder %s176, 0
    %s179 = sadd.s32 %s178, 1
    %s180 = scalar_select %p177, %s178, %s179
    %p183 = pneg %p177
    %p184 = scmp.eq.s32.totalorder %s13, 1
    %p185 = por %p183, %p184
    %p186 = scmp.ne.s32.totalorder %s178, %s181
    %p187 = scmp.eq.s32.totalorder %s13, 0
    %p188 = por %p186, %p187
    %p189 = scmp.ne.s32.totalorder %s178, %s181
    %p190 = scmp.eq.s32.totalorder %s18, 1
    %p191 = por %p189, %p190
    %p192 = scmp.ne.s32.totalorder %s181, %s182
    %p193 = scmp.eq.s32.totalorder %s18, 0
    %p194 = por %p192, %p193
    %p195 = scmp.ne.s32.totalorder %s181, %s182
    %p196 = scmp.eq.s32.totalorder %s19, 1
    %p197 = por %p195, %p196
    %p199 = scmp.ne.s32.totalorder %s182, %s198
    %p200 = scmp.eq.s32.totalorder %s19, 0
    %p201 = por %p199, %p200
    %s202 = ssub.s32 %s22, %s31
    %p203 = scmp.eq.s32.totalorder %s202, 0
    %s205 = sadd.s32 %s204, 1
    %s206 = scalar_select %p203, %s204, %s205
    %p209 = pneg %p203
    %p210 = scmp.eq.s32.totalorder %s13, 1
    %p211 = por %p209, %p210
    %p212 = scmp.ne.s32.totalorder %s204, %s207
    %p213 = scmp.eq.s32.totalorder %s13, 0
    %p214 = por %p212, %p213
    %p215 = scmp.ne.s32.totalorder %s204, %s207
    %p216 = scmp.eq.s32.totalorder %s18, 1
    %p217 = por %p215, %p216
    %p218 = scmp.ne.s32.totalorder %s207, %s208
    %p219 = scmp.eq.s32.totalorder %s18, 0
    %p220 = por %p218, %p219
    %p221 = scmp.ne.s32.totalorder %s207, %s208
    %p222 = scmp.eq.s32.totalorder %s19, 1
    %p223 = por %p221, %p222
    %p225 = scmp.ne.s32.totalorder %s208, %s224
    %p226 = scmp.eq.s32.totalorder %s19, 0
    %p227 = por %p225, %p226
    %s228 = ssub.s32 %s20, %s39
    %s229 = ssub.s32 %s21, %s35
    %s230 = sor.u32 %s228, %s229
    %p231 = scmp.eq.s32.totalorder %s230, 0
    %s233 = sadd.s32 %s232, 1
    %s234 = scalar_select %p231, %s232, %s233
    %p237 = pneg %p231
    %p238 = scmp.eq.s32.totalorder %s13, 1
    %p239 = por %p237, %p238
    %p240 = scmp.ne.s32.totalorder %s232, %s235
    %p241 = scmp.eq.s32.totalorder %s13, 0
    %p242 = por %p240, %p241
    %p243 = scmp.ne.s32.totalorder %s232, %s235
    %p244 = scmp.eq.s32.totalorder %s18, 1
    %p245 = por %p243, %p244
    %p246 = scmp.ne.s32.totalorder %s235, %s236
    %p247 = scmp.eq.s32.totalorder %s18, 0
    %p248 = por %p246, %p247
    %p249 = scmp.ne.s32.totalorder %s235, %s236
    %p250 = scmp.eq.s32.totalorder %s19, 1
    %p251 = por %p249, %p250
    %p253 = scmp.ne.s32.totalorder %s236, %s252
    %p254 = scmp.eq.s32.totalorder %s19, 0
    %p255 = por %p253, %p254
    %p256 = scmp.le.s32.totalorder 1, %s13
    %p257 = scmp.lt.s32.totalorder %s13, 3
    %p258 = pnand %p256, %p257
    %p259 = pneg %p258
    // Predicated region
    $region9: #{transformer_forward.12} parent=5 // pred_check
      _
    $region10: #{transformer_forward.12} parent=5 // pred_check_branch
      %261 = sbr.rel (%p258) target = $region12
    $region11: #{transformer_forward.12} parent=5 // pred_region
      %s262 = ssub.s32 %s13, 1
      // Predicated region
      $region13: #{transformer_forward.12} parent=11 // pred_check
        %p263 = pneg %p142
      $region14: #{transformer_forward.12} parent=11 // pred_check_branch
        %265 = sbr.rel (%p263) target = $region16
      $region15: #{transformer_forward.12} parent=11 // pred_region
        %p266 = scmp.lt.s32.totalorder %s24, 0
        %s267 = scalar_select %p266, %s24, 0
        %s268 = smul.addr %s267, 8
        %s269 = scalar_lea.vmem %s3, %s268
      $region16: #{transformer_forward.12} parent=11 // pred_fallthru
        _
      // Predicated region
      $region17: #{transformer_forward.12} parent=11 // pred_check
        %p270 = pneg %p168
      $region18: #{transformer_forward.12} parent=11 // pred_check_branch
        %272 = sbr.rel (%p270) target = $region20
      $region19: #{transformer_forward.12} parent=11 // pred_region
        %p273 = scmp.lt.s32.totalorder %s24, 0
        %s274 = scalar_select %p273, %s24, 0
        %s275 = smul.addr %s274, 8
        %s276 = scalar_lea.vmem %s4, %s275
      $region20: #{transformer_forward.12} parent=11 // pred_fallthru
        _
      // Predicated region
      $region21: #{transformer_forward.12} parent=11 // pred_check
        %p277 = pneg %p194
      $region22: #{transformer_forward.12} parent=11 // pred_check_branch
        %279 = sbr.rel (%p277) target = $region24
      $region23: #{transformer_forward.12} parent=11 // pred_region
        %p280 = scmp.lt.s32.totalorder %s25, 0
        %s281 = scalar_select %p280, %s25, 0
        %s282 = smul.addr %s281, 8
        %s283 = scalar_lea.vmem %s5, %s282
      $region24: #{transformer_forward.12} parent=11 // pred_fallthru
        _
      // Predicated region
      $region25: #{transformer_forward.12} parent=11 // pred_check
        %p284 = pneg %p220
      $region26: #{transformer_forward.12} parent=11 // pred_check_branch
        %286 = sbr.rel (%p284) target = $region28
      $region27: #{transformer_forward.12} parent=11 // pred_region
        %p287 = scmp.lt.s32.totalorder %s25, 0
        %s288 = scalar_select %p287, %s25, 0
        %s289 = smul.addr %s288, 8
        %s290 = scalar_lea.vmem %s6, %s289
      $region28: #{transformer_forward.12} parent=11 // pred_fallthru
        _
    $region12: #{transformer_forward.12} parent=5 // pred_fallthru
      _
    %p291 = scmp.lt.s32.totalorder %s13, 2
    // Predicated region
    $region29: #{transformer_forward.12} parent=5 // pred_check
      %p292 = pneg %p291
    $region30: #{transformer_forward.12} parent=5 // pred_check_branch
      %294 = sbr.rel (%p292) target = $region32
    $region31: #{transformer_forward.12} parent=5 // pred_region
      // Predicated region
      $region33: #{transformer_forward.12} parent=31 // pred_check
        %p295 = pneg %p54
      $region34: #{transformer_forward.12} parent=31 // pred_check_branch
        %297 = sbr.rel (%p295) target = $region36
      $region35: #{transformer_forward.12} parent=31 // pred_region
        %p298 = scmp.lt.s32.totalorder %s20, 1
        %s299 = scalar_select %p298, %s20, 1
        %p300 = scmp.lt.s32.totalorder %s21, 0
        %s301 = scalar_select %p300, %s21, 0
        %s302 = smul.addr %s299, 4
        %s303 = sadd.s32 %s301, %s302
        %s304 = smul.addr %s303, 4
        %s305 = scalar_lea.vmem %s0, %s304
      $region36: #{transformer_forward.12} parent=31 // pred_fallthru
        _
      // Predicated region
      $region37: #{transformer_forward.12} parent=31 // pred_check
        %p306 = pneg %p82
      $region38: #{transformer_forward.12} parent=31 // pred_check_branch
        %308 = sbr.rel (%p306) target = $region40
      $region39: #{transformer_forward.12} parent=31 // pred_region
        %p309 = scmp.lt.s32.totalorder %s20, 1
        %s310 = scalar_select %p309, %s20, 1
        %p311 = scmp.lt.s32.totalorder %s22, 0
        %s312 = scalar_select %p311, %s22, 0
        %s313 = smul.addr %s310, 4
        %s314 = sadd.s32 %s312, %s313
        %s315 = smul.addr %s314, 4
        %s316 = scalar_lea.vmem %s1, %s315
      $region40: #{transformer_forward.12} parent=31 // pred_fallthru
        _
      // Predicated region
      $region41: #{transformer_forward.12} parent=31 // pred_check
        %p317 = pneg %p110
      $region42: #{transformer_forward.12} parent=31 // pred_check_branch
        %319 = sbr.rel (%p317) target = $region44
      $region43: #{transformer_forward.12} parent=31 // pred_region
        %p320 = scmp.lt.s32.totalorder %s20, 1
        %s321 = scalar_select %p320, %s20, 1
        %p322 = scmp.lt.s32.totalorder %s22, 0
        %s323 = scalar_select %p322, %s22, 0
        %s324 = smul.addr %s321, 4
        %s325 = sadd.s32 %s323, %s324
        %s326 = smul.addr %s325, 4
        %s327 = scalar_lea.vmem %s2, %s326
      $region44: #{transformer_forward.12} parent=31 // pred_fallthru
        _
    $region32: #{transformer_forward.12} parent=5 // pred_fallthru
      _
    %p328 = scmp.le.s32.totalorder 1, %s13
    %p329 = scmp.lt.s32.totalorder %s13, 3
    %p330 = pnand %p328, %p329
    %p331 = pneg %p330
    // Predicated region
    $region45: #{transformer_forward.12} parent=5 // pred_check
      _
    $region46: #{transformer_forward.12} parent=5 // pred_check_branch
      %333 = sbr.rel (%p330) target = $region48
    $region47: #{transformer_forward.12} parent=5 // pred_region
      %s334 = ssub.s32 %s13, 1
      %p335 = scmp.lt.s32.totalorder %s23, 1
      %s336 = scalar_select %p335, %s23, 1
      %p337 = scmp.lt.s32.totalorder %s24, 0
      %s338 = scalar_select %p337, %s24, 0
      %s339 = smul.addr %s336, 4
      %s340 = sadd.s32 %s338, %s339
      %s341 = smul.addr %s340, 4
      %s342 = scalar_lea.vmem %s0, %s341
      %p343 = pneg %p60
      %p344 = pneg %p57
      %p345 = scmp.lt.s32.totalorder %s23, 1
      %s346 = scalar_select %p345, %s23, 1
      %p347 = scmp.lt.s32.totalorder %s25, 0
      %s348 = scalar_select %p347, %s25, 0
      %s349 = smul.addr %s346, 4
      %s350 = sadd.s32 %s348, %s349
      %s351 = smul.addr %s350, 4
      %s352 = scalar_lea.vmem %s1, %s351
      %p353 = pneg %p88
      %p354 = pneg %p85
      %p355 = scmp.lt.s32.totalorder %s23, 1
      %s356 = scalar_select %p355, %s23, 1
      %p357 = scmp.lt.s32.totalorder %s25, 0
      %s358 = scalar_select %p357, %s25, 0
      %s359 = smul.addr %s356, 4
      %s360 = sadd.s32 %s358, %s359
      %s361 = smul.addr %s360, 4
      %s362 = scalar_lea.vmem %s2, %s361
      %p363 = pneg %p116
      %p364 = pneg %p113
      %p365 = scmp.lt.s32.totalorder %s24, 0
      %s366 = scalar_select %p365, %s24, 0
      %s367 = smul.addr %s366, 8
      %s368 = scalar_lea.vmem %s3, %s367
      %p369 = pneg %p142
      %p370 = pneg %p139
      %p371 = scmp.lt.s32.totalorder %s24, 0
      %s372 = scalar_select %p371, %s24, 0
      %s373 = smul.addr %s372, 8
      %s374 = scalar_lea.vmem %s4, %s373
      %p375 = pneg %p168
      %p376 = pneg %p165
      %p377 = scmp.lt.s32.totalorder %s25, 0
      %s378 = scalar_select %p377, %s25, 0
      %s379 = smul.addr %s378, 8
      %s380 = scalar_lea.vmem %s5, %s379
      %p381 = pneg %p194
      %p382 = pneg %p191
      %p383 = scmp.lt.s32.totalorder %s25, 0
      %s384 = scalar_select %p383, %s25, 0
      %s385 = smul.addr %s384, 8
      %s386 = scalar_lea.vmem %s6, %s385
      %p387 = pneg %p220
      %p388 = pneg %p217
      %p389 = pneg %p248
      %p390 = pneg %p245
      %p391 = scmp.lt.s32.totalorder %s23, 1
      %s392 = scalar_select %p391, %s23, 1
      %p393 = scmp.lt.s32.totalorder %s24, 0
      %s394 = scalar_select %p393, %s24, 0
      %s395 = smul.addr %s392, 4
      %s396 = sadd.s32 %s394, %s395
      %s397 = smul.addr %s396, 4
      %s398 = scalar_lea.vmem %s7, %s397
      %p399 = scmp.lt.s32.totalorder %s23, 1
      %s400 = scalar_select %p399, %s23, 1
      %p401 = scmp.lt.s32.totalorder %s24, 0
      %s402 = scalar_select %p401, %s24, 0
      %s403 = smul.addr %s400, 4
      %s404 = sadd.s32 %s402, %s403
      %s405 = smul.addr %s404, 4
      %s406 = scalar_lea.vmem %s0, %s405
      %p407 = scmp.lt.s32.totalorder %s23, 1
      %s408 = scalar_select %p407, %s23, 1
      %p409 = scmp.lt.s32.totalorder %s25, 0
      %s410 = scalar_select %p409, %s25, 0
      %s411 = smul.addr %s408, 4
      %s412 = sadd.s32 %s410, %s411
      %s413 = smul.addr %s412, 4
      %s414 = scalar_lea.vmem %s1, %s413
      %p415 = scmp.lt.s32.totalorder %s23, 1
      %s416 = scalar_select %p415, %s23, 1
      %p417 = scmp.lt.s32.totalorder %s25, 0
      %s418 = scalar_select %p417, %s25, 0
      %s419 = smul.addr %s416, 4
      %s420 = sadd.s32 %s418, %s419
      %s421 = smul.addr %s420, 4
      %s422 = scalar_lea.vmem %s2, %s421
      %p423 = scmp.lt.s32.totalorder %s24, 0
      %s424 = scalar_select %p423, %s24, 0
      %s425 = smul.addr %s424, 8
      %s426 = scalar_lea.vmem %s3, %s425
      %p427 = scmp.lt.s32.totalorder %s24, 0
      %s428 = scalar_select %p427, %s24, 0
      %s429 = smul.addr %s428, 8
      %s430 = scalar_lea.vmem %s4, %s429
      %p431 = scmp.lt.s32.totalorder %s25, 0
      %s432 = scalar_select %p431, %s25, 0
      %s433 = smul.addr %s432, 8
      %s434 = scalar_lea.vmem %s5, %s433
      %p435 = scmp.lt.s32.totalorder %s25, 0
      %s436 = scalar_select %p435, %s25, 0
      %s437 = smul.addr %s436, 8
      %s438 = scalar_lea.vmem %s6, %s437
      %p439 = scmp.lt.s32.totalorder %s23, 1
      %s440 = scalar_select %p439, %s23, 1
      %p441 = scmp.lt.s32.totalorder %s24, 0
      %s442 = scalar_select %p441, %s24, 0
      %s443 = smul.addr %s440, 4
      %s444 = sadd.s32 %s442, %s443
      %s445 = smul.addr %s444, 4
      %s446 = scalar_lea.vmem %s7, %s445
      %p448 = scmp.eq.s32.totalorder %s25, 0
      // Predicated region
      $region49: #{transformer_forward.12} parent=47 // pred_check
        %p449 = pneg %p448
      $region50: #{transformer_forward.12} parent=47 // pred_check_branch
        %451 = sbr.rel (%p449) target = $region52
      $region51: #{transformer_forward.12} parent=47 // pred_region
        %vm452 = vcmask 7168
        %453 = vst.msk [vmem:[#allocation2] sm:$0xff] %vm452, -inf
        %454 = vst.msk [vmem:[#allocation2 + $0x8] sm:$0xff] %vm452, -inf
        %455 = vst.msk [vmem:[#allocation2 + $0x10] sm:$0xff] %vm452, -inf
        %456 = vst.msk [vmem:[#allocation2 + $0x18] sm:$0xff] %vm452, -inf
        %457 = vst.msk [vmem:[#allocation3] sm:$0xff] %vm452, 0.0
        %458 = vst.msk [vmem:[#allocation3 + $0x8] sm:$0xff] %vm452, 0.0
        %459 = vst.msk [vmem:[#allocation3 + $0x10] sm:$0xff] %vm452, 0.0
        %460 = vst.msk [vmem:[#allocation3 + $0x18] sm:$0xff] %vm452, 0.0
        %vm461 = vcmask 130048
        %462 = vst.msk [vmem:[#allocation4] sm:$0xff] %vm461, 0.0
        %463 = vst.msk [vmem:[#allocation4 + $0x8] sm:$0xff] %vm461, 0.0
        %464 = vst.msk [vmem:[#allocation4 + $0x10] sm:$0xff] %vm461, 0.0
        %465 = vst.msk [vmem:[#allocation4 + $0x18] sm:$0xff] %vm461, 0.0
      $region52: #{transformer_forward.12} parent=47 // pred_fallthru
        _
      %v466 = vld [vmem:[%s406] sm:$0xf]
      %v467 = vld [vmem:[%s406 + $0x4] sm:$0xf]
      %v468 = vld [vmem:[%s406 + $0x8] sm:$0xf]
      %v469 = vld [vmem:[%s406 + $0xc] sm:$0xf]
      %v470 = vunpack.c.l.bf16 %v466
      %v471 = vunpack.c.l.bf16 %v467
      %v472 = vunpack.c.l.bf16 %v468
      %v473 = vunpack.c.l.bf16 %v469
      %v474 = vld [vmem:[%s426] sm:$0xff]
      %v475 = vld [vmem:[%s430] sm:$0xff]
      %v476 = vmul.f32 %v470, %v474
      %v477 = vmul.f32 %v471, %v474
      %v478 = vmul.f32 %v472, %v474
      %v479 = vmul.f32 %v473, %v474
      %481 = vrot.lane.b32.xlu0 %v475, 8
      %v482 = vpop.permute.xlu0 %481
      %v484 = vmul.f32 %v470, %v482
      %v485 = vmul.f32 %v471, %v482
      %v486 = vmul.f32 %v472, %v482
      %v487 = vmul.f32 %v473, %v482
      %492 = vrot.lane.b32.xlu0 %v484, 120
      %v493 = vpop.permute.xlu0 %492
      %494 = vrot.lane.b32.xlu0 %v485, 120
      %v495 = vpop.permute.xlu0 %494
      %496 = vrot.lane.b32.xlu0 %v486, 120
      %v497 = vpop.permute.xlu0 %496
      %498 = vrot.lane.b32.xlu0 %v487, 120
      %v499 = vpop.permute.xlu0 %498
      %v504 = vsub.f32 %v476, %v493
      %v505 = vsub.f32 %v477, %v495
      %v506 = vsub.f32 %v478, %v497
      %v507 = vsub.f32 %v479, %v499
      %v508 = vmul.f32 %v470, %v475
      %v509 = vmul.f32 %v471, %v475
      %v510 = vmul.f32 %v472, %v475
      %v511 = vmul.f32 %v473, %v475
      %513 = vrot.lane.b32.xlu0 %v474, 8
      %v514 = vpop.permute.xlu0 %513
      %v516 = vmul.f32 %v470, %v514
      %v517 = vmul.f32 %v471, %v514
      %v518 = vmul.f32 %v472, %v514
      %v519 = vmul.f32 %v473, %v514
      %524 = vrot.lane.b32.xlu0 %v516, 120
      %v525 = vpop.permute.xlu0 %524
      %526 = vrot.lane.b32.xlu0 %v517, 120
      %v527 = vpop.permute.xlu0 %526
      %528 = vrot.lane.b32.xlu0 %v518, 120
      %v529 = vpop.permute.xlu0 %528
      %530 = vrot.lane.b32.xlu0 %v519, 120
      %v531 = vpop.permute.xlu0 %530
      %v536 = vadd.f32 %v508, %v525
      %v537 = vadd.f32 %v509, %v527
      %v538 = vadd.f32 %v510, %v529
      %v539 = vadd.f32 %v511, %v531
      %544 = vrot.lane.b32.xlu0 %v536, 8
      %v545 = vpop.permute.xlu0 %544
      %546 = vrot.lane.b32.xlu0 %v537, 8
      %v547 = vpop.permute.xlu0 %546
      %548 = vrot.lane.b32.xlu0 %v538, 8
      %v549 = vpop.permute.xlu0 %548
      %550 = vrot.lane.b32.xlu0 %v539, 8
      %v551 = vpop.permute.xlu0 %550
      %vm556 = vcmask 64512
      %v557 = vsel %vm556, %v504, %v545
      %v558 = vsel %vm556, %v505, %v547
      %v559 = vsel %vm556, %v506, %v549
      %v560 = vsel %vm556, %v507, %v551
      %v561 = vld [vmem:[%s414] sm:$0xf]
      %v562 = vld [vmem:[%s414 + $0x4] sm:$0xf]
      %v563 = vld [vmem:[%s414 + $0x8] sm:$0xf]
      %v564 = vld [vmem:[%s414 + $0xc] sm:$0xf]
      %v565 = vunpack.c.l.bf16 %v561
      %v566 = vunpack.c.l.bf16 %v562
      %v567 = vunpack.c.l.bf16 %v563
      %v568 = vunpack.c.l.bf16 %v564
      %v569 = vld [vmem:[%s434] sm:$0xff]
      %v570 = vld [vmem:[%s438] sm:$0xff]
      %v571 = vmul.f32 %v565, %v569
      %v572 = vmul.f32 %v566, %v569
      %v573 = vmul.f32 %v567, %v569
      %v574 = vmul.f32 %v568, %v569
      %576 = vrot.lane.b32.xlu0 %v570, 8
      %v577 = vpop.permute.xlu0 %576
      %v579 = vmul.f32 %v565, %v577
      %v580 = vmul.f32 %v566, %v577
      %v581 = vmul.f32 %v567, %v577
      %v582 = vmul.f32 %v568, %v577
      %587 = vrot.lane.b32.xlu0 %v579, 120
      %v588 = vpop.permute.xlu0 %587
      %589 = vrot.lane.b32.xlu0 %v580, 120
      %v590 = vpop.permute.xlu0 %589
      %591 = vrot.lane.b32.xlu0 %v581, 120
      %v592 = vpop.permute.xlu0 %591
      %593 = vrot.lane.b32.xlu0 %v582, 120
      %v594 = vpop.permute.xlu0 %593
      %v599 = vsub.f32 %v571, %v588
      %v600 = vsub.f32 %v572, %v590
      %v601 = vsub.f32 %v573, %v592
      %v602 = vsub.f32 %v574, %v594
      %v603 = vmul.f32 %v565, %v570
      %v604 = vmul.f32 %v566, %v570
      %v605 = vmul.f32 %v567, %v570
      %v606 = vmul.f32 %v568, %v570
      %608 = vrot.lane.b32.xlu0 %v569, 8
      %v609 = vpop.permute.xlu0 %608
      %v611 = vmul.f32 %v565, %v609
      %v612 = vmul.f32 %v566, %v609
      %v613 = vmul.f32 %v567, %v609
      %v614 = vmul.f32 %v568, %v609
      %619 = vrot.lane.b32.xlu0 %v611, 120
      %v620 = vpop.permute.xlu0 %619
      %621 = vrot.lane.b32.xlu0 %v612, 120
      %v622 = vpop.permute.xlu0 %621
      %623 = vrot.lane.b32.xlu0 %v613, 120
      %v624 = vpop.permute.xlu0 %623
      %625 = vrot.lane.b32.xlu0 %v614, 120
      %v626 = vpop.permute.xlu0 %625
      %v631 = vadd.f32 %v603, %v620
      %v632 = vadd.f32 %v604, %v622
      %v633 = vadd.f32 %v605, %v624
      %v634 = vadd.f32 %v606, %v626
      %639 = vrot.lane.b32.xlu0 %v631, 8
      %v640 = vpop.permute.xlu0 %639
      %641 = vrot.lane.b32.xlu0 %v632, 8
      %v642 = vpop.permute.xlu0 %641
      %643 = vrot.lane.b32.xlu0 %v633, 8
      %v644 = vpop.permute.xlu0 %643
      %645 = vrot.lane.b32.xlu0 %v634, 8
      %v646 = vpop.permute.xlu0 %645
      %v651 = vsel %vm556, %v599, %v640
      %v652 = vsel %vm556, %v600, %v642
      %v653 = vsel %vm556, %v601, %v644
      %v654 = vsel %vm556, %v602, %v646
      %v655 = vld [vmem:[%s422] sm:$0xf]
      %v656 = vld [vmem:[%s422 + $0x4] sm:$0xf]
      %v657 = vld [vmem:[%s422 + $0x8] sm:$0xf]
      %v658 = vld [vmem:[%s422 + $0xc] sm:$0xf]
      %v659 = vpack.c.bf16 %v557, %v557
      %v660 = vpack.c.bf16 %v558, %v558
      %v661 = vpack.c.bf16 %v559, %v559
      %v662 = vpack.c.bf16 %v560, %v560
      %v663 = vpack.c.bf16 %v651, %v651
      %v664 = vpack.c.bf16 %v652, %v652
      %v665 = vpack.c.bf16 %v653, %v653
      %v666 = vpack.c.bf16 %v654, %v654
      %vm667 = vcmask 130048
      %v669 = vsel %vm667, %v659, 0
      %v672 = vsel %vm667, %v663, 0
      %674 = vmatpush.bf16.xpose.msra.mxu0 0
      %675 = vmatpush.bf16.xpose.msra.mxu0 0
      %676 = vmatpush.bf16.xpose.msra.mxu0 0
      %677 = vmatpush.bf16.xpose.msra.mxu0 0
      %678 = vmatpush.bf16.xpose.msra.mxu0 0
      %679 = vmatpush.bf16.xpose.msra.mxu0 0
      %680 = vmatpush.bf16.xpose.msra.mxu0 0
      %681 = vmatpush.bf16.xpose.msra.mxu0 %v672
      %682 = vmatmul.bf16.gmra.mxu0 %v669
      %v683 = vpop.f32.mrf.mxu0
      %v684 = vadd.f32 0.0, %v683
      %v685 = vpop.f32.mrf.mxu0
      %686 = vdwg.mxu0
      %v688 = vsel %vm667, %v660, 0
      %v691 = vsel %vm667, %v664, 0
      %693 = vmatpush.bf16.xpose.msra.mxu0 0
      %694 = vmatpush.bf16.xpose.msra.mxu0 0
      %695 = vmatpush.bf16.xpose.msra.mxu0 0
      %696 = vmatpush.bf16.xpose.msra.mxu0 0
      %697 = vmatpush.bf16.xpose.msra.mxu0 0
      %698 = vmatpush.bf16.xpose.msra.mxu0 0
      %699 = vmatpush.bf16.xpose.msra.mxu0 0
      %700 = vmatpush.bf16.xpose.msra.mxu0 %v691
      %701 = vmatmul.bf16.gmra.mxu0 %v688
      %v702 = vpop.f32.mrf.mxu0
      %v703 = vadd.f32 0.0, %v702
      %v704 = vpop.f32.mrf.mxu0
      %705 = vdwg.mxu0
      %v707 = vsel %vm667, %v661, 0
      %v710 = vsel %vm667, %v665, 0
      %712 = vmatpush.bf16.xpose.msra.mxu0 0
      %713 = vmatpush.bf16.xpose.msra.mxu0 0
      %714 = vmatpush.bf16.xpose.msra.mxu0 0
      %715 = vmatpush.bf16.xpose.msra.mxu0 0
      %716 = vmatpush.bf16.xpose.msra.mxu0 0
      %717 = vmatpush.bf16.xpose.msra.mxu0 0
      %718 = vmatpush.bf16.xpose.msra.mxu0 0
      %719 = vmatpush.bf16.xpose.msra.mxu0 %v710
      %720 = vmatmul.bf16.gmra.mxu0 %v707
      %v721 = vpop.f32.mrf.mxu0
      %v722 = vadd.f32 0.0, %v721
      %v723 = vpop.f32.mrf.mxu0
      %724 = vdwg.mxu0
      %v726 = vsel %vm667, %v662, 0
      %v729 = vsel %vm667, %v666, 0
      %731 = vmatpush.bf16.xpose.msra.mxu0 0
      %732 = vmatpush.bf16.xpose.msra.mxu0 0
      %733 = vmatpush.bf16.xpose.msra.mxu0 0
      %734 = vmatpush.bf16.xpose.msra.mxu0 0
      %735 = vmatpush.bf16.xpose.msra.mxu0 0
      %736 = vmatpush.bf16.xpose.msra.mxu0 0
      %737 = vmatpush.bf16.xpose.msra.mxu0 0
      %738 = vmatpush.bf16.xpose.msra.mxu0 %v729
      %739 = vmatmul.bf16.gmra.mxu0 %v726
      %v740 = vpop.f32.mrf.mxu0
      %v741 = vadd.f32 0.0, %v740
      %v742 = vpop.f32.mrf.mxu0
      %743 = vdwg.mxu0
      %v744 = vmul.f32 %v684, 0.25
      %v745 = vmul.f32 %v703, 0.25
      %v746 = vmul.f32 %v722, 0.25
      %v747 = vmul.f32 %v741, 0.25
      %s748 = smul.u32 %s24, 8
      %v749 = vlaneseq
      %v750 = vshrl.u32 %v749, 7
      %v751 = vstv %s748
      %v752 = vadd.s32 %v751, %v750
      %s753 = smul.u32 %s25, 8
      %v754 = vlaneseq
      %v755 = vand.u32 %v754, 127
      %v756 = vstv %s753
      %v757 = vadd.s32 %v756, %v755
      %v758 = vadd.s32 %v752, 1
      %vm759 = vcmp.ge.s32.totalorder %v757, %v758
      %v760 = vsel %vm759, 1, 0
      %vm761 = vcmp.eq.s32.totalorder %v760, 1
      %v762 = vsel %vm761, -inf, %v744
      %v763 = vsel %vm761, -inf, %v745
      %v764 = vsel %vm761, -inf, %v746
      %v765 = vsel %vm761, -inf, %v747
      %v766 = vld [vmem:[#allocation2] sm:$0xff]
      %v767 = vld [vmem:[#allocation2 + $0x8] sm:$0xff]
      %v768 = vld [vmem:[#allocation2 + $0x10] sm:$0xff]
      %v769 = vld [vmem:[#allocation2 + $0x18] sm:$0xff]
      %v770 = vsel %vm556, %v762, -inf
      %771 = vmax.xlane.f32.xlu0 %v770
      %v772 = vpop.xlane.xlu0 %771
      %v773 = vsel %vm556, %v763, -inf
      %774 = vmax.xlane.f32.xlu0 %v773
      %v775 = vpop.xlane.xlu0 %774
      %v776 = vsel %vm556, %v764, -inf
      %777 = vmax.xlane.f32.xlu0 %v776
      %v778 = vpop.xlane.xlu0 %777
      %v779 = vsel %vm556, %v765, -inf
      %780 = vmax.xlane.f32.xlu0 %v779
      %v781 = vpop.xlane.xlu0 %780
      %v782 = vmax.f32 %v766, %v772
      %v783 = vmax.f32 %v767, %v775
      %v784 = vmax.f32 %v768, %v778
      %v785 = vmax.f32 %v769, %v781
      %v786 = vsub.f32 %v766, %v782
      %v787 = vsub.f32 %v767, %v783
      %v788 = vsub.f32 %v768, %v784
      %v789 = vsub.f32 %v769, %v785
      %v790 = vmul.f32 %v786, 1.442695
      %v791 = vpow.pop %v790
      %v792 = vmul.f32 %v787, 1.442695
      %v793 = vpow.pop %v792
      %v794 = vmul.f32 %v788, 1.442695
      %v795 = vpow.pop %v794
      %v796 = vmul.f32 %v789, 1.442695
      %v797 = vpow.pop %v796
      %799 = vset.pattern.permute.xlu0 0
      %800 = vperm.xlu0 %799, %v782
      %v801 = vpop.permute.xlu0 %800
      %804 = vset.pattern.permute.xlu0 0
      %805 = vperm.xlu0 %804, %v783
      %v806 = vpop.permute.xlu0 %805
      %809 = vset.pattern.permute.xlu0 0
      %810 = vperm.xlu0 %809, %v784
      %v811 = vpop.permute.xlu0 %810
      %814 = vset.pattern.permute.xlu0 0
      %815 = vperm.xlu0 %814, %v785
      %v816 = vpop.permute.xlu0 %815
      %v818 = vsub.f32 %v762, %v801
      %v819 = vsub.f32 %v763, %v806
      %v820 = vsub.f32 %v764, %v811
      %v821 = vsub.f32 %v765, %v816
      %v822 = vmul.f32 %v818, 1.442695
      %v823 = vpow.pop %v822
      %v824 = vmul.f32 %v819, 1.442695
      %v825 = vpow.pop %v824
      %v826 = vmul.f32 %v820, 1.442695
      %v827 = vpow.pop %v826
      %v828 = vmul.f32 %v821, 1.442695
      %v829 = vpow.pop %v828
      %v830 = vld [vmem:[#allocation3] sm:$0xff]
      %v831 = vld [vmem:[#allocation3 + $0x8] sm:$0xff]
      %v832 = vld [vmem:[#allocation3 + $0x10] sm:$0xff]
      %v833 = vld [vmem:[#allocation3 + $0x18] sm:$0xff]
      %v834 = vmul.f32 %v791, %v830
      %v835 = vmul.f32 %v793, %v831
      %v836 = vmul.f32 %v795, %v832
      %v837 = vmul.f32 %v797, %v833
      %v838 = vsel %vm556, %v823, 0.0
      %839 = vadd.xlane.f32.xlu0 %v838
      %v840 = vpop.xlane.xlu0 %839
      %v841 = vsel %vm556, %v825, 0.0
      %842 = vadd.xlane.f32.xlu0 %v841
      %v843 = vpop.xlane.xlu0 %842
      %v844 = vsel %vm556, %v827, 0.0
      %845 = vadd.xlane.f32.xlu0 %v844
      %v846 = vpop.xlane.xlu0 %845
      %v847 = vsel %vm556, %v829, 0.0
      %848 = vadd.xlane.f32.xlu0 %v847
      %v849 = vpop.xlane.xlu0 %848
      %v850 = vadd.f32 %v834, %v840
      %v851 = vadd.f32 %v835, %v843
      %v852 = vadd.f32 %v836, %v846
      %v853 = vadd.f32 %v837, %v849
      %vm854 = vcmask 7168
      %855 = vst.msk [vmem:[#allocation3] sm:$0xff] %vm854, %v850
      %856 = vst.msk [vmem:[#allocation3 + $0x8] sm:$0xff] %vm854, %v851
      %857 = vst.msk [vmem:[#allocation3 + $0x10] sm:$0xff] %vm854, %v852
      %858 = vst.msk [vmem:[#allocation3 + $0x18] sm:$0xff] %vm854, %v853
      %v859 = vld [vmem:[#allocation4] sm:$0xff]
      %v860 = vld [vmem:[#allocation4 + $0x8] sm:$0xff]
      %v861 = vld [vmem:[#allocation4 + $0x10] sm:$0xff]
      %v862 = vld [vmem:[#allocation4 + $0x18] sm:$0xff]
      %864 = vset.pattern.permute.xlu0 0
      %865 = vperm.xlu0 %864, %v791
      %v866 = vpop.permute.xlu0 %865
      %869 = vset.pattern.permute.xlu0 0
      %870 = vperm.xlu0 %869, %v793
      %v871 = vpop.permute.xlu0 %870
      %874 = vset.pattern.permute.xlu0 0
      %875 = vperm.xlu0 %874, %v795
      %v876 = vpop.permute.xlu0 %875
      %879 = vset.pattern.permute.xlu0 0
      %880 = vperm.xlu0 %879, %v797
      %v881 = vpop.permute.xlu0 %880
      %v883 = vmul.f32 %v866, %v859
      %v884 = vmul.f32 %v871, %v860
      %v885 = vmul.f32 %v876, %v861
      %v886 = vmul.f32 %v881, %v862
      %v887 = vpack.c.bf16 %v823, %v823
      %v888 = vpack.c.bf16 %v825, %v825
      %v889 = vpack.c.bf16 %v827, %v827
      %v890 = vpack.c.bf16 %v829, %v829
      %v892 = vsel %vm556, %v887, 0
      %vm894 = vcmask 1043456
      %v896 = vsel %vm894, %v655, 0
      %898 = vmatpush.bf16.msra.mxu0 0
      %899 = vmatpush.bf16.msra.mxu0 0
      %900 = vmatpush.bf16.msra.mxu0 0
      %901 = vmatpush.bf16.msra.mxu0 0
      %902 = vmatpush.bf16.msra.mxu0 0
      %903 = vmatpush.bf16.msra.mxu0 0
      %904 = vmatpush.bf16.msra.mxu0 0
      %905 = vmatpush.bf16.msra.mxu0 %v896
      %906 = vmatmul.bf16.gmra.mxu0 %v892
      %v907 = vpop.f32.mrf.mxu0
      %v908 = vadd.f32 0.0, %v907
      %v909 = vpop.f32.mrf.mxu0
      %910 = vdwg.mxu0
      %v912 = vsel %vm556, %v888, 0
      %v915 = vsel %vm894, %v656, 0
      %917 = vmatpush.bf16.msra.mxu0 0
      %918 = vmatpush.bf16.msra.mxu0 0
      %919 = vmatpush.bf16.msra.mxu0 0
      %920 = vmatpush.bf16.msra.mxu0 0
      %921 = vmatpush.bf16.msra.mxu0 0
      %922 = vmatpush.bf16.msra.mxu0 0
      %923 = vmatpush.bf16.msra.mxu0 0
      %924 = vmatpush.bf16.msra.mxu0 %v915
      %925 = vmatmul.bf16.gmra.mxu0 %v912
      %v926 = vpop.f32.mrf.mxu0
      %v927 = vadd.f32 0.0, %v926
      %v928 = vpop.f32.mrf.mxu0
      %929 = vdwg.mxu0
      %v931 = vsel %vm556, %v889, 0
      %v934 = vsel %vm894, %v657, 0
      %936 = vmatpush.bf16.msra.mxu0 0
      %937 = vmatpush.bf16.msra.mxu0 0
      %938 = vmatpush.bf16.msra.mxu0 0
      %939 = vmatpush.bf16.msra.mxu0 0
      %940 = vmatpush.bf16.msra.mxu0 0
      %941 = vmatpush.bf16.msra.mxu0 0
      %942 = vmatpush.bf16.msra.mxu0 0
      %943 = vmatpush.bf16.msra.mxu0 %v934
      %944 = vmatmul.bf16.gmra.mxu0 %v931
      %v945 = vpop.f32.mrf.mxu0
      %v946 = vadd.f32 0.0, %v945
      %v947 = vpop.f32.mrf.mxu0
      %948 = vdwg.mxu0
      %v950 = vsel %vm556, %v890, 0
      %v953 = vsel %vm894, %v658, 0
      %955 = vmatpush.bf16.msra.mxu0 0
      %956 = vmatpush.bf16.msra.mxu0 0
      %957 = vmatpush.bf16.msra.mxu0 0
      %958 = vmatpush.bf16.msra.mxu0 0
      %959 = vmatpush.bf16.msra.mxu0 0
      %960 = vmatpush.bf16.msra.mxu0 0
      %961 = vmatpush.bf16.msra.mxu0 0
      %962 = vmatpush.bf16.msra.mxu0 %v953
      %963 = vmatmul.bf16.gmra.mxu0 %v950
      %v964 = vpop.f32.mrf.mxu0
      %v965 = vadd.f32 0.0, %v964
      %v966 = vpop.f32.mrf.mxu0
      %967 = vdwg.mxu0
      %v968 = vadd.f32 %v883, %v908
      %v969 = vadd.f32 %v884, %v927
      %v970 = vadd.f32 %v885, %v946
      %v971 = vadd.f32 %v886, %v965
      %972 = vst.msk [vmem:[#allocation4] sm:$0xff] %vm667, %v968
      %973 = vst.msk [vmem:[#allocation4 + $0x8] sm:$0xff] %vm667, %v969
      %974 = vst.msk [vmem:[#allocation4 + $0x10] sm:$0xff] %vm667, %v970
      %975 = vst.msk [vmem:[#allocation4 + $0x18] sm:$0xff] %vm667, %v971
      %976 = vst.msk [vmem:[#allocation2] sm:$0xff] %vm854, %v782
      %977 = vst.msk [vmem:[#allocation2 + $0x8] sm:$0xff] %vm854, %v783
      %978 = vst.msk [vmem:[#allocation2 + $0x10] sm:$0xff] %vm854, %v784
      %979 = vst.msk [vmem:[#allocation2 + $0x18] sm:$0xff] %vm854, %v785
      // Predicated region
      $region53: #{transformer_forward.12} parent=47 // pred_check
        %p980 = pneg %p448
      $region54: #{transformer_forward.12} parent=47 // pred_check_branch
        %982 = sbr.rel (%p980) target = $region56
      $region55: #{transformer_forward.12} parent=47 // pred_region
        %v983 = vld [vmem:[#allocation4] sm:$0xff]
        %v984 = vld [vmem:[#allocation4 + $0x8] sm:$0xff]
        %v985 = vld [vmem:[#allocation4 + $0x10] sm:$0xff]
        %v986 = vld [vmem:[#allocation4 + $0x18] sm:$0xff]
        %v987 = vld [vmem:[#allocation3] sm:$0xff]
        %v988 = vld [vmem:[#allocation3 + $0x8] sm:$0xff]
        %v989 = vld [vmem:[#allocation3 + $0x10] sm:$0xff]
        %v990 = vld [vmem:[#allocation3 + $0x18] sm:$0xff]
        %v991 = vrcp.pop %v987
        %v992 = vrcp.pop %v988
        %v993 = vrcp.pop %v989
        %v994 = vrcp.pop %v990
        %996 = vset.pattern.permute.xlu0 0
        %997 = vperm.xlu0 %996, %v991
        %v998 = vpop.permute.xlu0 %997
        %1001 = vset.pattern.permute.xlu0 0
        %1002 = vperm.xlu0 %1001, %v992
        %v1003 = vpop.permute.xlu0 %1002
        %1006 = vset.pattern.permute.xlu0 0
        %1007 = vperm.xlu0 %1006, %v993
        %v1008 = vpop.permute.xlu0 %1007
        %1011 = vset.pattern.permute.xlu0 0
        %1012 = vperm.xlu0 %1011, %v994
        %v1013 = vpop.permute.xlu0 %1012
        %v1015 = vmul.f32 %v983, %v998
        %v1016 = vmul.f32 %v984, %v1003
        %v1017 = vmul.f32 %v985, %v1008
        %v1018 = vmul.f32 %v986, %v1013
        %v1019 = vpack.c.bf16 %v1015, %v1015
        %v1020 = vpack.c.bf16 %v1016, %v1016
        %v1021 = vpack.c.bf16 %v1017, %v1017
        %v1022 = vpack.c.bf16 %v1018, %v1018
        %vm1023 = vcmask 125952
        %1024 = vst.msk [vmem:[%s446] sm:$0xf] %vm1023, %v1019
        %1025 = vst.msk [vmem:[%s446 + $0x4] sm:$0xf] %vm1023, %v1020
        %1026 = vst.msk [vmem:[%s446 + $0x8] sm:$0xf] %vm1023, %v1021
        %1027 = vst.msk [vmem:[%s446 + $0xc] sm:$0xf] %vm1023, %v1022
      $region56: #{transformer_forward.12} parent=47 // pred_fallthru
        _
      %p1028 = scmp.lt.s32.totalorder %s23, 1
      %s1029 = scalar_select %p1028, %s23, 1
      %p1030 = scmp.lt.s32.totalorder %s24, 0
      %s1031 = scalar_select %p1030, %s24, 0
      %s1032 = smul.addr %s1029, 4
      %s1033 = sadd.s32 %s1031, %s1032
      %s1034 = smul.addr %s1033, 4
      %s1035 = scalar_lea.vmem %s7, %s1034
      // Predicated region
      $region57: #{transformer_forward.12} parent=47 // pred_check
        %p1036 = pneg %p245
      $region58: #{transformer_forward.12} parent=47 // pred_check_branch
        %1038 = sbr.rel (%p1036) target = $region60
      $region59: #{transformer_forward.12} parent=47 // pred_region
        _
      $region60: #{transformer_forward.12} parent=47 // pred_fallthru
        _
    $region48: #{transformer_forward.12} parent=5 // pred_fallthru
      _
    %p1039 = scmp.le.s32.totalorder 2, %s13
    // Predicated region
    $region61: #{transformer_forward.12} parent=5 // pred_check
      %p1040 = pneg %p1039
    $region62: #{transformer_forward.12} parent=5 // pred_check_branch
      %1042 = sbr.rel (%p1040) target = $region64
    $region63: #{transformer_forward.12} parent=5 // pred_region
      %s1043 = ssub.s32 %s13, 2
      // Predicated region
      $region65: #{transformer_forward.12} parent=63 // pred_check
        %p1044 = pneg %p251
      $region66: #{transformer_forward.12} parent=63 // pred_check_branch
        %1046 = sbr.rel (%p1044) target = $region68
      $region67: #{transformer_forward.12} parent=63 // pred_region
        %p1047 = scmp.lt.s32.totalorder %s26, 1
        %s1048 = scalar_select %p1047, %s26, 1
        %p1049 = scmp.lt.s32.totalorder %s27, 0
        %s1050 = scalar_select %p1049, %s27, 0
        %s1051 = smul.addr %s1048, 4
        %s1052 = sadd.s32 %s1050, %s1051
        %s1053 = smul.addr %s1052, 4
        %s1054 = scalar_lea.vmem %s7, %s1053
      $region68: #{transformer_forward.12} parent=63 // pred_fallthru
        _
    $region64: #{transformer_forward.12} parent=5 // pred_fallthru
      _
  $region6: #{transformer_forward.12} parent=0 // loop_footer
    %s17 = sadd.s32 1, %s13
  $region7: #{transformer_forward.12} parent=0 // loop_footer_branch
    %12 = sbr.rel target = $region3
  $region8: #{transformer_forward.12} parent=0 // loop_exit
    _

// kernel: transformer_forward.15
$region0: #{transformer_forward.15}
  #allocation0 [shape = 'u32[]', space=smem, size = 0x4, offset = 0x4, fixed_abs, tag = 'smem constant byte address 0x4 - core index']
  #allocation1 [shape = 'u32[72,128]{1,0:T(1,128)}', space=vmem, size = 0x9000, scoped, tag = 'internal scratch']
  #allocation2 [shape = 'f32[16,64]{1,0:T(8,128)}', space=vmem, size = 0x2000, scoped, tag = 'scratch operand']
  %s0 = inlined_call_operand.vmem [shape: bf16[16,192], index: 0, kind: input, shape index: {}]
  %s1 = inlined_call_operand.vmem [shape: bf16[192,64], index: 1, kind: input, shape index: {}]
  %s2 = inlined_call_operand.vmem [shape: bf16[16,64], index: 2, kind: output, shape index: {}]
  %s3 = sld [smem:[#allocation0]]
  $region26: #{transformer_forward.15} parent=0
    _
  %s5 = ssub.s32 1, %s3
  %s6 = scalar_select 0, %s5, %s3
  // Predicated region
  $region2: #{transformer_forward.15} parent=0 // pred_check
    _
  $region3: #{transformer_forward.15} parent=0 // pred_check_branch
    %8 = sbr.rel (0) target = $region5
  $region4: #{transformer_forward.15} parent=0 // pred_region
    _
  $region5: #{transformer_forward.15} parent=0 // pred_fallthru
    _
  // Predicated region
  $region6: #{transformer_forward.15} parent=0 // pred_check
    _
  $region7: #{transformer_forward.15} parent=0 // pred_check_branch
    %10 = sbr.rel (0) target = $region9
  $region8: #{transformer_forward.15} parent=0 // pred_region
    _
  $region9: #{transformer_forward.15} parent=0 // pred_fallthru
    _
  %p12 = scmp.eq.s32.totalorder 0, 0
  // Predicated region
  $region10: #{transformer_forward.15} parent=0 // pred_check
    %p13 = pneg %p12
  $region11: #{transformer_forward.15} parent=0 // pred_check_branch
    %15 = sbr.rel (%p13) target = $region13
  $region12: #{transformer_forward.15} parent=0 // pred_region
    %vm16 = vcmask 523264
    %17 = vst.msk [vmem:[#allocation2] sm:$0xff] %vm16, 0.0
    %18 = vst.msk [vmem:[#allocation2 + $0x8] sm:$0xff] %vm16, 0.0
  $region13: #{transformer_forward.15} parent=0 // pred_fallthru
    _
  %v19 = vld [vmem:[#allocation2] sm:$0xff]
  %v20 = vld [vmem:[#allocation2 + $0x8] sm:$0xff]
  %v21 = vld [vmem:[%s0] sm:$0xff]
  %v22 = vld [vmem:[%s0 + $0x8] sm:$0xff]
  %v23 = vld [vmem:[%s1] sm:$0xf]
  %v24 = vld [vmem:[%s1 + $0x4] sm:$0xf]
  %v25 = vld [vmem:[%s1 + $0x8] sm:$0xf]
  %v26 = vld [vmem:[%s1 + $0xc] sm:$0xf]
  %v27 = vld [vmem:[%s1 + $0x10] sm:$0xf]
  %v28 = vld [vmem:[%s1 + $0x14] sm:$0xf]
  %v29 = vld [vmem:[%s1 + $0x18] sm:$0xf]
  %v30 = vld [vmem:[%s1 + $0x1c] sm:$0xf]
  %v31 = vld [vmem:[%s1 + $0x20] sm:$0xf]
  %v32 = vld [vmem:[%s1 + $0x24] sm:$0xf]
  %v33 = vld [vmem:[%s1 + $0x28] sm:$0xf]
  %v34 = vld [vmem:[%s1 + $0x2c] sm:$0xf]
  %v35 = vld [vmem:[%s1 + $0x30] sm:$0xf]
  %v36 = vld [vmem:[%s1 + $0x34] sm:$0xf]
  %v37 = vld [vmem:[%s1 + $0x38] sm:$0xf]
  %v38 = vld [vmem:[%s1 + $0x3c] sm:$0xf]
  %v39 = vld [vmem:[%s1 + $0x40] sm:$0xf]
  %v40 = vld [vmem:[%s1 + $0x44] sm:$0xf]
  %v41 = vld [vmem:[%s1 + $0x48] sm:$0xf]
  %v42 = vld [vmem:[%s1 + $0x4c] sm:$0xf]
  %v43 = vld [vmem:[%s1 + $0x50] sm:$0xf]
  %v44 = vld [vmem:[%s1 + $0x54] sm:$0xf]
  %v45 = vld [vmem:[%s1 + $0x58] sm:$0xf]
  %v46 = vld [vmem:[%s1 + $0x5c] sm:$0xf]
  %v49 = vunpack.c.l.b16 %v21
  %v50 = vunpack.c.h.b16 %v21
  %v51 = vunpack.c.l.b16 %v22
  %v52 = vunpack.c.h.b16 %v22
  %v53 = vpack.c.b16 %v51, %v49
  %v54 = vpack.c.b16 %v52, %v50
  %v80 = vunpack.c.l.b16 %v23
  %v81 = vunpack.c.l.b16 %v24
  %v82 = vunpack.c.l.b16 %v25
  %v83 = vunpack.c.l.b16 %v26
  %v84 = vunpack.c.l.b16 %v27
  %v85 = vunpack.c.l.b16 %v28
  %v86 = vunpack.c.l.b16 %v29
  %v87 = vunpack.c.l.b16 %v30
  %v88 = vunpack.c.l.b16 %v31
  %v89 = vunpack.c.l.b16 %v32
  %v90 = vunpack.c.l.b16 %v33
  %v91 = vunpack.c.l.b16 %v34
  %v92 = vunpack.c.l.b16 %v35
  %v93 = vunpack.c.l.b16 %v36
  %v94 = vunpack.c.l.b16 %v37
  %v95 = vunpack.c.l.b16 %v38
  %v96 = vunpack.c.l.b16 %v39
  %v97 = vunpack.c.l.b16 %v40
  %v98 = vunpack.c.l.b16 %v41
  %v99 = vunpack.c.l.b16 %v42
  %v100 = vunpack.c.l.b16 %v43
  %v101 = vunpack.c.l.b16 %v44
  %v102 = vunpack.c.l.b16 %v45
  %v103 = vunpack.c.l.b16 %v46
  %v104 = vpack.c.b16 %v81, %v80
  %v105 = vpack.c.b16 %v83, %v82
  %v106 = vpack.c.b16 %v85, %v84
  %v107 = vpack.c.b16 %v87, %v86
  %v108 = vpack.c.b16 %v89, %v88
  %v109 = vpack.c.b16 %v91, %v90
  %v110 = vpack.c.b16 %v93, %v92
  %v111 = vpack.c.b16 %v95, %v94
  %v112 = vpack.c.b16 %v97, %v96
  %v113 = vpack.c.b16 %v99, %v98
  %v114 = vpack.c.b16 %v101, %v100
  %v115 = vpack.c.b16 %v103, %v102
  %vm128 = vcmask 523264
  %v130 = vsel %vm128, %v54, 0
  %132 = vmatpush.bf16.msra.mxu0 %v111
  %133 = vmatpush.bf16.msra.mxu0 %v110
  %134 = vmatpush.bf16.msra.mxu0 %v109
  %135 = vmatpush.bf16.msra.mxu0 %v108
  %136 = vmatpush.bf16.msra.mxu0 %v107
  %137 = vmatpush.bf16.msra.mxu0 %v106
  %138 = vmatpush.bf16.msra.mxu0 %v105
  %139 = vmatpush.bf16.msra.mxu0 %v104
  %140 = vmatmul.bf16.gmra.mxu0 %v53
  %v141 = vpop.f32.mrf.mxu0
  %v142 = vadd.f32 0.0, %v141
  %v143 = vpop.f32.mrf.mxu0
  %v144 = vadd.f32 0.0, %v143
  %145 = vdwg.mxu0
  %146 = vmatpush.bf16.msra.mxu0 0
  %147 = vmatpush.bf16.msra.mxu0 0
  %148 = vmatpush.bf16.msra.mxu0 0
  %149 = vmatpush.bf16.msra.mxu0 0
  %150 = vmatpush.bf16.msra.mxu0 %v115
  %151 = vmatpush.bf16.msra.mxu0 %v114
  %152 = vmatpush.bf16.msra.mxu0 %v113
  %153 = vmatpush.bf16.msra.mxu0 %v112
  %154 = vmatmul.bf16.gmra.mxu0 %v130
  %v155 = vpop.f32.mrf.mxu0
  %v156 = vadd.f32 %v142, %v155
  %v157 = vpop.f32.mrf.mxu0
  %v158 = vadd.f32 %v144, %v157
  %159 = vdwg.mxu0
  %v160 = vadd.f32 %v19, %v156
  %v161 = vadd.f32 %v20, %v158
  %162 = vst.msk [vmem:[#allocation2] sm:$0xff] %vm128, %v160
  %163 = vst.msk [vmem:[#allocation2 + $0x8] sm:$0xff] %vm128, %v161
  // Predicated region
  $region14: #{transformer_forward.15} parent=0 // pred_check
    %p164 = pneg %p12
  $region15: #{transformer_forward.15} parent=0 // pred_check_branch
    %166 = sbr.rel (%p164) target = $region17
  $region16: #{transformer_forward.15} parent=0 // pred_region
    %v167 = vld [vmem:[#allocation2] sm:$0xff]
    %v168 = vld [vmem:[#allocation2 + $0x8] sm:$0xff]
    %v169 = vpack.c.bf16 %v167, %v167
    %v170 = vpack.c.bf16 %v168, %v168
    %vm171 = vcmask 519168
    %172 = vst.msk [vmem:[%s2] sm:$0xf] %vm171, %v169
    %173 = vst.msk [vmem:[%s2 + $0x4] sm:$0xf] %vm171, %v170
  $region17: #{transformer_forward.15} parent=0 // pred_fallthru
    _
  // Predicated region
  $region18: #{transformer_forward.15} parent=0 // pred_check
    _
  $region19: #{transformer_forward.15} parent=0 // pred_check_branch
    %175 = sbr.rel (0) target = $region21
  $region20: #{transformer_forward.15} parent=0 // pred_region
    _
  $region21: #{transformer_forward.15} parent=0 // pred_fallthru
    _
  // Predicated region
  $region22: #{transformer_forward.15} parent=0 // pred_check
    _
  $region23: #{transformer_forward.15} parent=0 // pred_check_branch
    %177 = sbr.rel (0) target = $region25
  $region24: #{transformer_forward.15} parent=0 // pred_region
    _
  $region25: #{transformer_forward.15} parent=0 // pred_fallthru
    _

// kernel: transformer_forward.21
$region0: #{transformer_forward.21}
  #allocation0 [shape = 'u32[]', space=smem, size = 0x4, offset = 0x4, fixed_abs, tag = 'smem constant byte address 0x4 - core index']
  #allocation1 [shape = 'u32[72,128]{1,0:T(1,128)}', space=vmem, size = 0x9000, scoped, tag = 'internal scratch']
  %s0 = inlined_call_operand.vmem [shape: bf16[16,64], index: 0, kind: input, shape index: {}]
  %s1 = inlined_call_operand.vmem [shape: f32[1,64], index: 1, kind: input, shape index: {}]
  %s2 = inlined_call_operand.vmem [shape: bf16[64,128], index: 2, kind: input, shape index: {}]
  %s3 = inlined_call_operand.hbm [shape: f32[16,128], index: 3, kind: output, shape index: {}]
  %s4 = sld [smem:[#allocation0]]
  $region22: #{transformer_forward.21} parent=0
    _
  %s6 = ssub.s32 1, %s4
  %s7 = scalar_select 0, %s6, %s4
  $region1: #{transformer_forward.21} parent=0
    #allocation2 [shape = 'u8[8192]{0}', space=vmem, size = 0x2000, scoped, tag = 'output window, operand 0, single buffered']
    #allocation3 [shape = 's32[1]{0}', space=sflag, size = 0x4, scoped, tag = 'scoped memory for transformer_forward.21']
    %8 = vsyncpa [#allocation3], 0
    // Predicated region
    $region2: #{transformer_forward.21} parent=1 // pred_check
      _
    $region3: #{transformer_forward.21} parent=1 // pred_check_branch
      %10 = sbr.rel (0) target = $region5
    $region4: #{transformer_forward.21} parent=1 // pred_region
      _
    $region5: #{transformer_forward.21} parent=1 // pred_fallthru
      _
    // Predicated region
    $region6: #{transformer_forward.21} parent=1 // pred_check
      _
    $region7: #{transformer_forward.21} parent=1 // pred_check_branch
      %12 = sbr.rel (0) target = $region9
    $region8: #{transformer_forward.21} parent=1 // pred_region
      _
    $region9: #{transformer_forward.21} parent=1 // pred_fallthru
      _
    // Predicated region
    $region10: #{transformer_forward.21} parent=1 // pred_check
      _
    $region11: #{transformer_forward.21} parent=1 // pred_check_branch
      %14 = sbr.rel (0) target = $region13
    $region12: #{transformer_forward.21} parent=1 // pred_region
      _
    $region13: #{transformer_forward.21} parent=1 // pred_fallthru
      _
    %v16 = vld [vmem:[%s0] sm:$0xf]
    %v17 = vld [vmem:[%s0 + $0x4] sm:$0xf]
    %v18 = vunpack.c.l.bf16 %v16
    %v19 = vunpack.c.l.bf16 %v17
    %v20 = vmul.f32 %v18, %v18
    %v21 = vmul.f32 %v19, %v19
    %vm22 = vcmask 523264
    %v23 = vsel %vm22, %v20, 0.0
    %24 = vadd.xlane.f32.xlu0 %v23
    %v25 = vpop.xlane.xlu0 %24
    %v26 = vsel %vm22, %v21, 0.0
    %27 = vadd.xlane.f32.xlu0 %v26
    %v28 = vpop.xlane.xlu0 %27
    %v29 = vrcp.pop 64.0
    %v30 = vmul.f32 64.0, %v29
    %v31 = vsub.f32 1.0, %v30
    %v32 = vmul.f32 %v29, %v31
    %v33 = vadd.f32 %v29, %v32
    %vm34 = vweird.f32 %v29
    %v35 = vsel %vm34, %v29, %v33
    %v36 = vmul.f32 %v25, %v35
    %v37 = vmul.f32 %v28, %v35
    %v38 = vadd.f32 %v36, 1e-05
    %v39 = vadd.f32 %v37, 1e-05
    %v40 = vrsqrt.pop %v38
    %v41 = vmul.f32 %v40, %v38
    %v42 = vmul.f32 %v41, %v40
    %v43 = vmul.f32 0.5, %v42
    %v44 = vsub.f32 1.5, %v43
    %v45 = vmul.f32 %v40, %v44
    %vm46 = vweird.f32 %v38
    %vm47 = vweird.f32 %v40
    %vm48 = vmor %vm46, %vm47
    %v49 = vsel %vm48, %v40, %v45
    %v50 = vrsqrt.pop %v39
    %v51 = vmul.f32 %v50, %v39
    %v52 = vmul.f32 %v51, %v50
    %v53 = vmul.f32 0.5, %v52
    %v54 = vsub.f32 1.5, %v53
    %v55 = vmul.f32 %v50, %v54
    %vm56 = vweird.f32 %v39
    %vm57 = vweird.f32 %v50
    %vm58 = vmor %vm56, %vm57
    %v59 = vsel %vm58, %v50, %v55
    %v60 = vmul.f32 %v18, %v49
    %v61 = vmul.f32 %v19, %v59
    %v62 = vld [vmem:[%s1] sm:$0x1]
    %v64 = vperm.slane %v62, 0
    %v66 = vmul.f32 %v60, %v64
    %v67 = vmul.f32 %v61, %v64
    %v68 = vpack.c.bf16 %v67, %v66
    %v69 = vld [vmem:[%s2] sm:$0xf]
    %v70 = vld [vmem:[%s2 + $0x4] sm:$0xf]
    %v71 = vld [vmem:[%s2 + $0x8] sm:$0xf]
    %v72 = vld [vmem:[%s2 + $0xc] sm:$0xf]
    %v73 = vld [vmem:[%s2 + $0x10] sm:$0xf]
    %v74 = vld [vmem:[%s2 + $0x14] sm:$0xf]
    %v75 = vld [vmem:[%s2 + $0x18] sm:$0xf]
    %v76 = vld [vmem:[%s2 + $0x1c] sm:$0xf]
    %v85 = vunpack.c.l.b16 %v69
    %v86 = vunpack.c.l.b16 %v70
    %v87 = vunpack.c.l.b16 %v71
    %v88 = vunpack.c.l.b16 %v72
    %v89 = vunpack.c.l.b16 %v73
    %v90 = vunpack.c.l.b16 %v74
    %v91 = vunpack.c.l.b16 %v75
    %v92 = vunpack.c.l.b16 %v76
    %v93 = vpack.c.b16 %v86, %v85
    %v94 = vpack.c.b16 %v88, %v87
    %v95 = vpack.c.b16 %v90, %v89
    %v96 = vpack.c.b16 %v92, %v91
    %v102 = vsel %vm22, %v68, 0
    %104 = vmatpush.bf16.msra.mxu0 0
    %105 = vmatpush.bf16.msra.mxu0 0
    %106 = vmatpush.bf16.msra.mxu0 0
    %107 = vmatpush.bf16.msra.mxu0 0
    %108 = vmatpush.bf16.msra.mxu0 %v96
    %109 = vmatpush.bf16.msra.mxu0 %v95
    %110 = vmatpush.bf16.msra.mxu0 %v94
    %111 = vmatpush.bf16.msra.mxu0 %v93
    %112 = vmatmul.bf16.gmra.mxu0 %v102
    %v113 = vpop.f32.mrf.mxu0
    %v114 = vadd.f32 0.0, %v113
    %v115 = vpop.f32.mrf.mxu0
    %v116 = vadd.f32 0.0, %v115
    %117 = vdwg.mxu0
    %118 = vst [vmem:[#allocation2] sm:$0xff] %v114
    %119 = vst [vmem:[#allocation2 + $0x8] sm:$0xff] %v116
    // Predicated region
    $region14: #{transformer_forward.21} parent=1 // pred_check
      _
    $region15: #{transformer_forward.21} parent=1 // pred_check_branch
      %121 = sbr.rel (0) target = $region17
    $region16: #{transformer_forward.21} parent=1 // pred_region
      %123 = vsyncadd [#allocation3], 0
      %s124 = sshll.u32 [#allocation2], 4
      %s125 = int_to_ptr.vmem [resolvable:$true] %s124
      %s126 = sshll.u32 %s3, 4
      %s127 = int_to_ptr.hbm [resolvable:$true] %s126
      %132 = dma.vmem_to_hbm [thread:$0]  %s125, 256, %s127, [#allocation3], 128, 128, 8
    $region17: #{transformer_forward.21} parent=1 // pred_fallthru
      _
    // Predicated region
    $region18: #{transformer_forward.21} parent=1 // pred_check
      _
    $region19: #{transformer_forward.21} parent=1 // pred_check_branch
      %134 = sbr.rel (0) target = $region21
    $region20: #{transformer_forward.21} parent=1 // pred_region
      %136 = dma.done [#allocation3], 256
    $region21: #{transformer_forward.21} parent=1 // pred_fallthru
      _
    %137 = vsyncpa [#allocation3], 1

</llo_original>
